<compile_context>
chip_gen: v6e
topology: v6e:2x2x1
jax: 0.10.0
libtpu: 0.0.40
codegen_flags: <defaults>
</compile_context>

<pallas_src>
import functools

import jax
import jax.numpy as jnp
from jax.experimental import pallas as pl
from jax.experimental.pallas import tpu as pltpu


# ------------------------------ fused kernel --------------------------------

def _encoder_fused_kernel(p1_ref, w1_ref, b1_ref, w2_ref, b2_ref,
                          wf1_ref, bf1_ref, wf2_ref, bf2_ref, alpha_ref,
                          out_ref, *, batch, blk):
    """Whole encoder forward on VMEM-resident data.

    p1_ref : [4*blk, 36]  conv1 im2col patches, 4 pool-parity row blocks,
                          rows inside a block ordered (ph, pw, b).
    w1_ref : [36, 8]      conv1 weight, rows (i*6+j).
    w2_ref : [72, 8]      conv2 weight, rows (i*3+j)*8 + ci.
    wf1_ref: [72, 64]     fc1 weight, rows (k*8 + co)  (k = oh2*3 + ow2).
    wf2_ref: [64, Nout]   fc2 weight.
    alpha  : SMEM [3]     PReLU alphas (a1, a2, a3).
    out_ref: [batch, Nout]
    """
    a1 = alpha_ref[0]
    a2 = alpha_ref[1]
    a3 = alpha_ref[2]

    def prelu(y, a):
        return jnp.where(y >= 0.0, y, a * y)

    # ---- conv1 + PReLU : one MXU dot over all four pool parities at once
    h1 = jnp.dot(p1_ref[...], w1_ref[...], preferred_element_type=jnp.float32)
    h1 = prelu(h1 + b1_ref[...], a1)                                # [4*blk, 8]

    # ---- MaxPool2d(2,2): elementwise max over the four parity row blocks
    pooled = jnp.maximum(
        jnp.maximum(h1[0 * blk:1 * blk, :], h1[1 * blk:2 * blk, :]),
        jnp.maximum(h1[2 * blk:3 * blk, :], h1[3 * blk:4 * blk, :]))
    # pooled rows: (ph*7 + pw)*batch + b ; lanes: 8 conv1 channels.

    def pool_rows(pr, pc):                                          # -> [batch, 8]
        r0 = (pr * 7 + pc) * batch
        return pooled[r0:r0 + batch, :]

    # ---- conv2: im2col built in-kernel from VMEM-resident pooled activations
    patch_blocks = []
    for oh in range(3):
        for ow in range(3):
            pieces = [pool_rows(2 * oh + i, 2 * ow + j)
                      for i in range(3) for j in range(3)]
            patch_blocks.append(jnp.concatenate(pieces, axis=1))    # [batch, 72]
    patches2 = jnp.concatenate(patch_blocks, axis=0)                # [9*batch, 72]

    h2 = jnp.dot(patches2, w2_ref[...], preferred_element_type=jnp.float32)
    h2 = prelu(h2 + b2_ref[...], a2)                                # [9*batch, 8]

    # ---- flatten (position k, channel co) into lanes for fc1 (wf1 pre-permuted)
    fc_in = jnp.concatenate(
        [h2[k * batch:(k + 1) * batch, :] for k in range(9)], axis=1)  # [batch, 72]

    # ---- fc1 + PReLU + fc2 ; final store is lane-dense (Nout = 128 lanes)
    h3 = jnp.dot(fc_in, wf1_ref[...], preferred_element_type=jnp.float32)
    h3 = prelu(h3 + bf1_ref[...], a3)                               # [batch, 64]
    out_ref[...] = (jnp.dot(h3, wf2_ref[...], preferred_element_type=jnp.float32)
                    + bf2_ref[...])


# --------------------------- wrapper-side plumbing ---------------------------

def _conv1_pool_patches(x):
    """x: [B,1,32,32] -> ([4*blk, 36] patches, blk).

    Patch columns are (i*6 + j) (matches wc1.reshape(8, 36)); rows are grouped
    into the four 2x2-pool parity blocks (s, t), rows inside a block ordered
    (ph, pw, b) and zero-padded to a multiple of 8 so in-kernel block slices
    stay tile-aligned.
    """
    # TODO(synk): the strided overlapping-window extraction itself stays in the
    # JAX wrapper (pure layout plumbing on an 8 KB input); Pallas has no clean
    # in-kernel strided-gather equivalent for this access pattern.
    B = x.shape[0]
    xs = x[:, 0]                                     # [B, 32, 32]
    rows = 49 * B
    blk = ((rows + 7) // 8) * 8
    blocks = []
    for s in range(2):
        for t in range(2):
            taps = []
            for i in range(6):
                for j in range(6):
                    r0, c0 = 2 * s + i, 2 * t + j
                    taps.append(xs[:, r0:r0 + 25:4, c0:c0 + 25:4])   # [B,7,7]
            blkmat = jnp.stack(taps, axis=-1)                        # [B,7,7,36]
            blkmat = jnp.transpose(blkmat, (1, 2, 0, 3)).reshape(rows, 36)
            if blk != rows:
                blkmat = jnp.concatenate(
                    [blkmat, jnp.zeros((blk - rows, 36), blkmat.dtype)], axis=0)
            blocks.append(blkmat)
    return jnp.concatenate(blocks, axis=0), blk


def _prep_kernel_params(p):
    """Reshape / permute torch-layout params into the kernel's layouts."""
    out_size = p["wf2"].shape[0]
    w1m = p["wc1"].reshape(8, 36).T                                  # [36, 8]
    w2m = jnp.transpose(p["wc2"], (2, 3, 1, 0)).reshape(72, 8)       # rows (i,j,ci)
    # fc1 columns: torch NCHW flatten order (co*9 + k) -> kernel order (k*8 + co)
    perm = jnp.array([co * 9 + k for k in range(9) for co in range(8)], jnp.int32)
    wf1m = p["wf1"][:, perm].T                                       # [72, 64]
    wf2m = p["wf2"].T                                                # [64, Nout]
    alphas = jnp.stack([p["a1"], p["a2"], p["a3"]]).astype(jnp.float32)
    f32 = lambda a: a.astype(jnp.float32)
    return {
        "w1": f32(w1m), "b1": f32(p["bc1"]).reshape(1, 8),
        "w2": f32(w2m), "b2": f32(p["bc2"]).reshape(1, 8),
        "wf1": f32(wf1m), "bf1": f32(p["bf1"]).reshape(1, 64),
        "wf2": f32(wf2m), "bf2": f32(p["bf2"]).reshape(1, out_size),
        "alphas": alphas,
    }


def encoder_forward(x, params):
    """x: [B, 1, 32, 32] (NCHW, like torch) -> [B, output_size]."""
    B = x.shape[0]
    kp = _prep_kernel_params(params)
    patches1, blk = _conv1_pool_patches(x.astype(jnp.float32))
    out_size = kp["wf2"].shape[1]

    kernel = functools.partial(_encoder_fused_kernel, batch=B, blk=blk)

    flops = int(2 * (4 * blk * 36 * 8 + 9 * B * 72 * 8
                     + B * 72 * 64 + B * 64 * out_size))
    bytes_accessed = int(4 * (patches1.size + kp["w1"].size + kp["b1"].size
                              + kp["w2"].size + kp["b2"].size
                              + kp["wf1"].size + kp["bf1"].size
                              + kp["wf2"].size + kp["bf2"].size
                              + 3 + B * out_size))

    vmem = pltpu.MemorySpace.VMEM
    smem = pltpu.MemorySpace.SMEM
    return pl.pallas_call(
        kernel,
        out_shape=jax.ShapeDtypeStruct((B, out_size), jnp.float32),
        in_specs=[pl.BlockSpec(memory_space=vmem)] * 9
                 + [pl.BlockSpec(memory_space=smem)],
        out_specs=pl.BlockSpec(memory_space=vmem),
        cost_estimate=pl.CostEstimate(flops=flops, transcendentals=0,
                                      bytes_accessed=bytes_accessed),
        # TODO(synk): for non-toy batch sizes, add a grid over the row dimension
        # with dimension_semantics=("parallel",) so v7x's two TensorCores split
        # the work; at B=2 a grid would only add per-step overhead.
    )(patches1, kp["w1"], kp["b1"], kp["w2"], kp["b2"],
      kp["wf1"], kp["bf1"], kp["wf2"], kp["bf2"], kp["alphas"])


# --------------------------------- params -----------------------------------

def init_params(key, output_size=128):
    ks = jax.random.split(key, 8)

    def unif(k, shape, fan_in):
        bound = 1.0 / jnp.sqrt(float(fan_in))
        return jax.random.uniform(k, shape, jnp.float32, -bound, bound)

    return {
        # Conv2d(1, 8, kernel=6x6, stride=2)
        "wc1": unif(ks[0], (8, 1, 6, 6), 1 * 6 * 6),
        "bc1": unif(ks[1], (8,), 1 * 6 * 6),
        "a1": jnp.float32(0.25),                      # PReLU default init
        # Conv2d(8, 8, kernel=3x3, stride=2)
        "wc2": unif(ks[2], (8, 8, 3, 3), 8 * 3 * 3),
        "bc2": unif(ks[3], (8,), 8 * 3 * 3),
        "a2": jnp.float32(0.25),
        # Linear(72, 64)
        "wf1": unif(ks[4], (64, 72), 72),
        "bf1": unif(ks[5], (64,), 72),
        "a3": jnp.float32(0.25),
        # Linear(64, output_size)
        "wf2": unif(ks[6], (output_size, 64), 64),
        "bf2": unif(ks[7], (output_size,), 64),
    }


# ----------------------------- pure-JAX reference ----------------------------

def reference_forward(x, p):
    prelu = lambda z, a: jnp.where(z >= 0, z, a * z)
    dn = ("NCHW", "OIHW", "NCHW")
    h = jax.lax.conv_general_dilated(x, p["wc1"], (2, 2), "VALID",
                                     dimension_numbers=dn)
    h = prelu(h + p["bc1"][None, :, None, None], p["a1"])
    h = jax.lax.reduce_window(h, -jnp.inf, jax.lax.max,
                              (1, 1, 2, 2), (1, 1, 2, 2), "VALID")
    h = jax.lax.conv_general_dilated(h, p["wc2"], (2, 2), "VALID",
                                     dimension_numbers=dn)
    h = prelu(h + p["bc2"][None, :, None, None], p["a2"])
    h = h.reshape(h.shape[0], -1)
    h = prelu(h @ p["wf1"].T + p["bf1"], p["a3"])
    return h @ p["wf2"].T + p["bf2"]


# ----------------------------------- main ------------------------------------

if __name__ == "__main__":
    key = jax.random.PRNGKey(0)
    x = jax.random.uniform(key, (2, 1, 32, 32), jnp.float32)   # NCHW, like torch.rand
    params = init_params(jax.random.PRNGKey(42))

    fwd = jax.jit(encoder_forward)
    out = jax.block_until_ready(fwd(x, params))
    assert out.shape == (2, 128), out.shape

    ref = jax.block_until_ready(reference_forward(x, params))
    err = float(jnp.max(jnp.abs(out - ref)))
    assert jnp.allclose(out, ref, rtol=1e-3, atol=1e-3), f"max abs diff = {err}"

    print("KERNEL_OK")
</pallas_src>

<mosaic_0001>
module attributes {stable_mosaic.version = 11 : i64} {
  func.func @_encoder_fused_kernel(%arg0: memref<416x36xf32, #tpu.memory_space<vmem>>, %arg1: memref<36x8xf32, #tpu.memory_space<vmem>>, %arg2: memref<1x8xf32, #tpu.memory_space<vmem>>, %arg3: memref<72x8xf32, #tpu.memory_space<vmem>>, %arg4: memref<1x8xf32, #tpu.memory_space<vmem>>, %arg5: memref<72x64xf32, #tpu.memory_space<vmem>>, %arg6: memref<1x64xf32, #tpu.memory_space<vmem>>, %arg7: memref<64x128xf32, #tpu.memory_space<vmem>>, %arg8: memref<1x128xf32, #tpu.memory_space<vmem>>, %arg9: memref<3xf32, #tpu.memory_space<smem>>, %arg10: memref<2x128xf32, #tpu.memory_space<vmem>>) attributes {dimension_semantics = [], scalar_prefetch = 0 : i64, scratch_operands = 0 : i64, tpu.core_type = #tpu.core_type<tc>} {
    %c0 = arith.constant 0 : index
    %0 = memref.load %arg9[%c0] : memref<3xf32, #tpu.memory_space<smem>>
    %c1 = arith.constant 1 : index
    %1 = memref.load %arg9[%c1] : memref<3xf32, #tpu.memory_space<smem>>
    %c2 = arith.constant 2 : index
    %2 = memref.load %arg9[%c2] : memref<3xf32, #tpu.memory_space<smem>>
    %c0_0 = arith.constant 0 : index
    %c0_1 = arith.constant 0 : index
    %3 = vector.load %arg0[%c0_0, %c0_1] : memref<416x36xf32, #tpu.memory_space<vmem>>, vector<416x36xf32>
    %c0_2 = arith.constant 0 : index
    %c0_3 = arith.constant 0 : index
    %4 = vector.load %arg1[%c0_2, %c0_3] : memref<36x8xf32, #tpu.memory_space<vmem>>, vector<36x8xf32>
    %cst = arith.constant dense<0.000000e+00> : vector<416x8xf32>
    %5 = tpu.matmul %3, %4, %cst {dimension_numbers = #tpu.dot_dimension_numbers<[1], [0], [0], [1], [0, 0, 1, 1], [], []>} : vector<416x36xf32>, vector<36x8xf32>, vector<416x8xf32> -> vector<416x8xf32>
    %c0_4 = arith.constant 0 : index
    %c0_5 = arith.constant 0 : index
    %6 = vector.load %arg2[%c0_4, %c0_5] : memref<1x8xf32, #tpu.memory_space<vmem>>, vector<1x8xf32>
    %7 = vector.broadcast %6 : vector<1x8xf32> to vector<416x8xf32>
    %8 = arith.addf %5, %7 : vector<416x8xf32>
    %cst_6 = arith.constant 0.000000e+00 : f32
    %9 = vector.broadcast %cst_6 : f32 to vector<416x8xf32>
    %10 = arith.cmpf oge, %8, %9 : vector<416x8xf32>
    %11 = vector.broadcast %0 : f32 to vector<416x8xf32>
    %12 = arith.mulf %11, %8 : vector<416x8xf32>
    %13 = arith.select %10, %8, %12 : vector<416x8xi1>, vector<416x8xf32>
    %14 = vector.extract_strided_slice %13 {offsets = [0, 0], sizes = [104, 8], strides = [1, 1]} : vector<416x8xf32> to vector<104x8xf32>
    %15 = vector.extract_strided_slice %13 {offsets = [104, 0], sizes = [104, 8], strides = [1, 1]} : vector<416x8xf32> to vector<104x8xf32>
    %16 = arith.maximumf %14, %15 : vector<104x8xf32>
    %17 = vector.extract_strided_slice %13 {offsets = [208, 0], sizes = [104, 8], strides = [1, 1]} : vector<416x8xf32> to vector<104x8xf32>
    %18 = vector.extract_strided_slice %13 {offsets = [312, 0], sizes = [104, 8], strides = [1, 1]} : vector<416x8xf32> to vector<104x8xf32>
    %19 = arith.maximumf %17, %18 : vector<104x8xf32>
    %20 = arith.maximumf %16, %19 : vector<104x8xf32>
    %21 = vector.extract_strided_slice %20 {offsets = [0, 0], sizes = [2, 8], strides = [1, 1]} : vector<104x8xf32> to vector<2x8xf32>
    %22 = vector.extract_strided_slice %20 {offsets = [2, 0], sizes = [2, 8], strides = [1, 1]} : vector<104x8xf32> to vector<2x8xf32>
    %23 = vector.extract_strided_slice %20 {offsets = [4, 0], sizes = [2, 8], strides = [1, 1]} : vector<104x8xf32> to vector<2x8xf32>
    %24 = vector.extract_strided_slice %20 {offsets = [14, 0], sizes = [2, 8], strides = [1, 1]} : vector<104x8xf32> to vector<2x8xf32>
    %25 = vector.extract_strided_slice %20 {offsets = [16, 0], sizes = [2, 8], strides = [1, 1]} : vector<104x8xf32> to vector<2x8xf32>
    %26 = vector.extract_strided_slice %20 {offsets = [18, 0], sizes = [2, 8], strides = [1, 1]} : vector<104x8xf32> to vector<2x8xf32>
    %27 = vector.extract_strided_slice %20 {offsets = [28, 0], sizes = [2, 8], strides = [1, 1]} : vector<104x8xf32> to vector<2x8xf32>
    %28 = vector.extract_strided_slice %20 {offsets = [30, 0], sizes = [2, 8], strides = [1, 1]} : vector<104x8xf32> to vector<2x8xf32>
    %29 = vector.extract_strided_slice %20 {offsets = [32, 0], sizes = [2, 8], strides = [1, 1]} : vector<104x8xf32> to vector<2x8xf32>
    %30 = tpu.concatenate %21, %22, %23, %24, %25, %26, %27, %28, %29 in 1 : vector<2x8xf32>, vector<2x8xf32>, vector<2x8xf32>, vector<2x8xf32>, vector<2x8xf32>, vector<2x8xf32>, vector<2x8xf32>, vector<2x8xf32>, vector<2x8xf32> -> vector<2x72xf32>
    %31 = vector.extract_strided_slice %20 {offsets = [4, 0], sizes = [2, 8], strides = [1, 1]} : vector<104x8xf32> to vector<2x8xf32>
    %32 = vector.extract_strided_slice %20 {offsets = [6, 0], sizes = [2, 8], strides = [1, 1]} : vector<104x8xf32> to vector<2x8xf32>
    %33 = vector.extract_strided_slice %20 {offsets = [8, 0], sizes = [2, 8], strides = [1, 1]} : vector<104x8xf32> to vector<2x8xf32>
    %34 = vector.extract_strided_slice %20 {offsets = [18, 0], sizes = [2, 8], strides = [1, 1]} : vector<104x8xf32> to vector<2x8xf32>
    %35 = vector.extract_strided_slice %20 {offsets = [20, 0], sizes = [2, 8], strides = [1, 1]} : vector<104x8xf32> to vector<2x8xf32>
    %36 = vector.extract_strided_slice %20 {offsets = [22, 0], sizes = [2, 8], strides = [1, 1]} : vector<104x8xf32> to vector<2x8xf32>
    %37 = vector.extract_strided_slice %20 {offsets = [32, 0], sizes = [2, 8], strides = [1, 1]} : vector<104x8xf32> to vector<2x8xf32>
    %38 = vector.extract_strided_slice %20 {offsets = [34, 0], sizes = [2, 8], strides = [1, 1]} : vector<104x8xf32> to vector<2x8xf32>
    %39 = vector.extract_strided_slice %20 {offsets = [36, 0], sizes = [2, 8], strides = [1, 1]} : vector<104x8xf32> to vector<2x8xf32>
    %40 = tpu.concatenate %31, %32, %33, %34, %35, %36, %37, %38, %39 in 1 : vector<2x8xf32>, vector<2x8xf32>, vector<2x8xf32>, vector<2x8xf32>, vector<2x8xf32>, vector<2x8xf32>, vector<2x8xf32>, vector<2x8xf32>, vector<2x8xf32> -> vector<2x72xf32>
    %41 = vector.extract_strided_slice %20 {offsets = [8, 0], sizes = [2, 8], strides = [1, 1]} : vector<104x8xf32> to vector<2x8xf32>
    %42 = vector.extract_strided_slice %20 {offsets = [10, 0], sizes = [2, 8], strides = [1, 1]} : vector<104x8xf32> to vector<2x8xf32>
    %43 = vector.extract_strided_slice %20 {offsets = [12, 0], sizes = [2, 8], strides = [1, 1]} : vector<104x8xf32> to vector<2x8xf32>
    %44 = vector.extract_strided_slice %20 {offsets = [22, 0], sizes = [2, 8], strides = [1, 1]} : vector<104x8xf32> to vector<2x8xf32>
    %45 = vector.extract_strided_slice %20 {offsets = [24, 0], sizes = [2, 8], strides = [1, 1]} : vector<104x8xf32> to vector<2x8xf32>
    %46 = vector.extract_strided_slice %20 {offsets = [26, 0], sizes = [2, 8], strides = [1, 1]} : vector<104x8xf32> to vector<2x8xf32>
    %47 = vector.extract_strided_slice %20 {offsets = [36, 0], sizes = [2, 8], strides = [1, 1]} : vector<104x8xf32> to vector<2x8xf32>
    %48 = vector.extract_strided_slice %20 {offsets = [38, 0], sizes = [2, 8], strides = [1, 1]} : vector<104x8xf32> to vector<2x8xf32>
    %49 = vector.extract_strided_slice %20 {offsets = [40, 0], sizes = [2, 8], strides = [1, 1]} : vector<104x8xf32> to vector<2x8xf32>
    %50 = tpu.concatenate %41, %42, %43, %44, %45, %46, %47, %48, %49 in 1 : vector<2x8xf32>, vector<2x8xf32>, vector<2x8xf32>, vector<2x8xf32>, vector<2x8xf32>, vector<2x8xf32>, vector<2x8xf32>, vector<2x8xf32>, vector<2x8xf32> -> vector<2x72xf32>
    %51 = vector.extract_strided_slice %20 {offsets = [28, 0], sizes = [2, 8], strides = [1, 1]} : vector<104x8xf32> to vector<2x8xf32>
    %52 = vector.extract_strided_slice %20 {offsets = [30, 0], sizes = [2, 8], strides = [1, 1]} : vector<104x8xf32> to vector<2x8xf32>
    %53 = vector.extract_strided_slice %20 {offsets = [32, 0], sizes = [2, 8], strides = [1, 1]} : vector<104x8xf32> to vector<2x8xf32>
    %54 = vector.extract_strided_slice %20 {offsets = [42, 0], sizes = [2, 8], strides = [1, 1]} : vector<104x8xf32> to vector<2x8xf32>
    %55 = vector.extract_strided_slice %20 {offsets = [44, 0], sizes = [2, 8], strides = [1, 1]} : vector<104x8xf32> to vector<2x8xf32>
    %56 = vector.extract_strided_slice %20 {offsets = [46, 0], sizes = [2, 8], strides = [1, 1]} : vector<104x8xf32> to vector<2x8xf32>
    %57 = vector.extract_strided_slice %20 {offsets = [56, 0], sizes = [2, 8], strides = [1, 1]} : vector<104x8xf32> to vector<2x8xf32>
    %58 = vector.extract_strided_slice %20 {offsets = [58, 0], sizes = [2, 8], strides = [1, 1]} : vector<104x8xf32> to vector<2x8xf32>
    %59 = vector.extract_strided_slice %20 {offsets = [60, 0], sizes = [2, 8], strides = [1, 1]} : vector<104x8xf32> to vector<2x8xf32>
    %60 = tpu.concatenate %51, %52, %53, %54, %55, %56, %57, %58, %59 in 1 : vector<2x8xf32>, vector<2x8xf32>, vector<2x8xf32>, vector<2x8xf32>, vector<2x8xf32>, vector<2x8xf32>, vector<2x8xf32>, vector<2x8xf32>, vector<2x8xf32> -> vector<2x72xf32>
    %61 = vector.extract_strided_slice %20 {offsets = [32, 0], sizes = [2, 8], strides = [1, 1]} : vector<104x8xf32> to vector<2x8xf32>
    %62 = vector.extract_strided_slice %20 {offsets = [34, 0], sizes = [2, 8], strides = [1, 1]} : vector<104x8xf32> to vector<2x8xf32>
    %63 = vector.extract_strided_slice %20 {offsets = [36, 0], sizes = [2, 8], strides = [1, 1]} : vector<104x8xf32> to vector<2x8xf32>
    %64 = vector.extract_strided_slice %20 {offsets = [46, 0], sizes = [2, 8], strides = [1, 1]} : vector<104x8xf32> to vector<2x8xf32>
    %65 = vector.extract_strided_slice %20 {offsets = [48, 0], sizes = [2, 8], strides = [1, 1]} : vector<104x8xf32> to vector<2x8xf32>
    %66 = vector.extract_strided_slice %20 {offsets = [50, 0], sizes = [2, 8], strides = [1, 1]} : vector<104x8xf32> to vector<2x8xf32>
    %67 = vector.extract_strided_slice %20 {offsets = [60, 0], sizes = [2, 8], strides = [1, 1]} : vector<104x8xf32> to vector<2x8xf32>
    %68 = vector.extract_strided_slice %20 {offsets = [62, 0], sizes = [2, 8], strides = [1, 1]} : vector<104x8xf32> to vector<2x8xf32>
    %69 = vector.extract_strided_slice %20 {offsets = [64, 0], sizes = [2, 8], strides = [1, 1]} : vector<104x8xf32> to vector<2x8xf32>
    %70 = tpu.concatenate %61, %62, %63, %64, %65, %66, %67, %68, %69 in 1 : vector<2x8xf32>, vector<2x8xf32>, vector<2x8xf32>, vector<2x8xf32>, vector<2x8xf32>, vector<2x8xf32>, vector<2x8xf32>, vector<2x8xf32>, vector<2x8xf32> -> vector<2x72xf32>
    %71 = vector.extract_strided_slice %20 {offsets = [36, 0], sizes = [2, 8], strides = [1, 1]} : vector<104x8xf32> to vector<2x8xf32>
    %72 = vector.extract_strided_slice %20 {offsets = [38, 0], sizes = [2, 8], strides = [1, 1]} : vector<104x8xf32> to vector<2x8xf32>
    %73 = vector.extract_strided_slice %20 {offsets = [40, 0], sizes = [2, 8], strides = [1, 1]} : vector<104x8xf32> to vector<2x8xf32>
    %74 = vector.extract_strided_slice %20 {offsets = [50, 0], sizes = [2, 8], strides = [1, 1]} : vector<104x8xf32> to vector<2x8xf32>
    %75 = vector.extract_strided_slice %20 {offsets = [52, 0], sizes = [2, 8], strides = [1, 1]} : vector<104x8xf32> to vector<2x8xf32>
    %76 = vector.extract_strided_slice %20 {offsets = [54, 0], sizes = [2, 8], strides = [1, 1]} : vector<104x8xf32> to vector<2x8xf32>
    %77 = vector.extract_strided_slice %20 {offsets = [64, 0], sizes = [2, 8], strides = [1, 1]} : vector<104x8xf32> to vector<2x8xf32>
    %78 = vector.extract_strided_slice %20 {offsets = [66, 0], sizes = [2, 8], strides = [1, 1]} : vector<104x8xf32> to vector<2x8xf32>
    %79 = vector.extract_strided_slice %20 {offsets = [68, 0], sizes = [2, 8], strides = [1, 1]} : vector<104x8xf32> to vector<2x8xf32>
    %80 = tpu.concatenate %71, %72, %73, %74, %75, %76, %77, %78, %79 in 1 : vector<2x8xf32>, vector<2x8xf32>, vector<2x8xf32>, vector<2x8xf32>, vector<2x8xf32>, vector<2x8xf32>, vector<2x8xf32>, vector<2x8xf32>, vector<2x8xf32> -> vector<2x72xf32>
    %81 = vector.extract_strided_slice %20 {offsets = [56, 0], sizes = [2, 8], strides = [1, 1]} : vector<104x8xf32> to vector<2x8xf32>
    %82 = vector.extract_strided_slice %20 {offsets = [58, 0], sizes = [2, 8], strides = [1, 1]} : vector<104x8xf32> to vector<2x8xf32>
    %83 = vector.extract_strided_slice %20 {offsets = [60, 0], sizes = [2, 8], strides = [1, 1]} : vector<104x8xf32> to vector<2x8xf32>
    %84 = vector.extract_strided_slice %20 {offsets = [70, 0], sizes = [2, 8], strides = [1, 1]} : vector<104x8xf32> to vector<2x8xf32>
    %85 = vector.extract_strided_slice %20 {offsets = [72, 0], sizes = [2, 8], strides = [1, 1]} : vector<104x8xf32> to vector<2x8xf32>
    %86 = vector.extract_strided_slice %20 {offsets = [74, 0], sizes = [2, 8], strides = [1, 1]} : vector<104x8xf32> to vector<2x8xf32>
    %87 = vector.extract_strided_slice %20 {offsets = [84, 0], sizes = [2, 8], strides = [1, 1]} : vector<104x8xf32> to vector<2x8xf32>
    %88 = vector.extract_strided_slice %20 {offsets = [86, 0], sizes = [2, 8], strides = [1, 1]} : vector<104x8xf32> to vector<2x8xf32>
    %89 = vector.extract_strided_slice %20 {offsets = [88, 0], sizes = [2, 8], strides = [1, 1]} : vector<104x8xf32> to vector<2x8xf32>
    %90 = tpu.concatenate %81, %82, %83, %84, %85, %86, %87, %88, %89 in 1 : vector<2x8xf32>, vector<2x8xf32>, vector<2x8xf32>, vector<2x8xf32>, vector<2x8xf32>, vector<2x8xf32>, vector<2x8xf32>, vector<2x8xf32>, vector<2x8xf32> -> vector<2x72xf32>
    %91 = vector.extract_strided_slice %20 {offsets = [60, 0], sizes = [2, 8], strides = [1, 1]} : vector<104x8xf32> to vector<2x8xf32>
    %92 = vector.extract_strided_slice %20 {offsets = [62, 0], sizes = [2, 8], strides = [1, 1]} : vector<104x8xf32> to vector<2x8xf32>
    %93 = vector.extract_strided_slice %20 {offsets = [64, 0], sizes = [2, 8], strides = [1, 1]} : vector<104x8xf32> to vector<2x8xf32>
    %94 = vector.extract_strided_slice %20 {offsets = [74, 0], sizes = [2, 8], strides = [1, 1]} : vector<104x8xf32> to vector<2x8xf32>
    %95 = vector.extract_strided_slice %20 {offsets = [76, 0], sizes = [2, 8], strides = [1, 1]} : vector<104x8xf32> to vector<2x8xf32>
    %96 = vector.extract_strided_slice %20 {offsets = [78, 0], sizes = [2, 8], strides = [1, 1]} : vector<104x8xf32> to vector<2x8xf32>
    %97 = vector.extract_strided_slice %20 {offsets = [88, 0], sizes = [2, 8], strides = [1, 1]} : vector<104x8xf32> to vector<2x8xf32>
    %98 = vector.extract_strided_slice %20 {offsets = [90, 0], sizes = [2, 8], strides = [1, 1]} : vector<104x8xf32> to vector<2x8xf32>
    %99 = vector.extract_strided_slice %20 {offsets = [92, 0], sizes = [2, 8], strides = [1, 1]} : vector<104x8xf32> to vector<2x8xf32>
    %100 = tpu.concatenate %91, %92, %93, %94, %95, %96, %97, %98, %99 in 1 : vector<2x8xf32>, vector<2x8xf32>, vector<2x8xf32>, vector<2x8xf32>, vector<2x8xf32>, vector<2x8xf32>, vector<2x8xf32>, vector<2x8xf32>, vector<2x8xf32> -> vector<2x72xf32>
    %101 = vector.extract_strided_slice %20 {offsets = [64, 0], sizes = [2, 8], strides = [1, 1]} : vector<104x8xf32> to vector<2x8xf32>
    %102 = vector.extract_strided_slice %20 {offsets = [66, 0], sizes = [2, 8], strides = [1, 1]} : vector<104x8xf32> to vector<2x8xf32>
    %103 = vector.extract_strided_slice %20 {offsets = [68, 0], sizes = [2, 8], strides = [1, 1]} : vector<104x8xf32> to vector<2x8xf32>
    %104 = vector.extract_strided_slice %20 {offsets = [78, 0], sizes = [2, 8], strides = [1, 1]} : vector<104x8xf32> to vector<2x8xf32>
    %105 = vector.extract_strided_slice %20 {offsets = [80, 0], sizes = [2, 8], strides = [1, 1]} : vector<104x8xf32> to vector<2x8xf32>
    %106 = vector.extract_strided_slice %20 {offsets = [82, 0], sizes = [2, 8], strides = [1, 1]} : vector<104x8xf32> to vector<2x8xf32>
    %107 = vector.extract_strided_slice %20 {offsets = [92, 0], sizes = [2, 8], strides = [1, 1]} : vector<104x8xf32> to vector<2x8xf32>
    %108 = vector.extract_strided_slice %20 {offsets = [94, 0], sizes = [2, 8], strides = [1, 1]} : vector<104x8xf32> to vector<2x8xf32>
    %109 = vector.extract_strided_slice %20 {offsets = [96, 0], sizes = [2, 8], strides = [1, 1]} : vector<104x8xf32> to vector<2x8xf32>
    %110 = tpu.concatenate %101, %102, %103, %104, %105, %106, %107, %108, %109 in 1 : vector<2x8xf32>, vector<2x8xf32>, vector<2x8xf32>, vector<2x8xf32>, vector<2x8xf32>, vector<2x8xf32>, vector<2x8xf32>, vector<2x8xf32>, vector<2x8xf32> -> vector<2x72xf32>
    %111 = tpu.concatenate %30, %40, %50, %60, %70, %80, %90, %100, %110 in 0 : vector<2x72xf32>, vector<2x72xf32>, vector<2x72xf32>, vector<2x72xf32>, vector<2x72xf32>, vector<2x72xf32>, vector<2x72xf32>, vector<2x72xf32>, vector<2x72xf32> -> vector<18x72xf32>
    %c0_7 = arith.constant 0 : index
    %c0_8 = arith.constant 0 : index
    %112 = vector.load %arg3[%c0_7, %c0_8] : memref<72x8xf32, #tpu.memory_space<vmem>>, vector<72x8xf32>
    %cst_9 = arith.constant dense<0.000000e+00> : vector<18x8xf32>
    %113 = tpu.matmul %111, %112, %cst_9 {dimension_numbers = #tpu.dot_dimension_numbers<[1], [0], [0], [1], [0, 0, 1, 1], [], []>} : vector<18x72xf32>, vector<72x8xf32>, vector<18x8xf32> -> vector<18x8xf32>
    %c0_10 = arith.constant 0 : index
    %c0_11 = arith.constant 0 : index
    %114 = vector.load %arg4[%c0_10, %c0_11] : memref<1x8xf32, #tpu.memory_space<vmem>>, vector<1x8xf32>
    %115 = vector.broadcast %114 : vector<1x8xf32> to vector<18x8xf32>
    %116 = arith.addf %113, %115 : vector<18x8xf32>
    %cst_12 = arith.constant 0.000000e+00 : f32
    %117 = vector.broadcast %cst_12 : f32 to vector<18x8xf32>
    %118 = arith.cmpf oge, %116, %117 : vector<18x8xf32>
    %119 = vector.broadcast %1 : f32 to vector<18x8xf32>
    %120 = arith.mulf %119, %116 : vector<18x8xf32>
    %121 = arith.select %118, %116, %120 : vector<18x8xi1>, vector<18x8xf32>
    %122 = vector.extract_strided_slice %121 {offsets = [0, 0], sizes = [2, 8], strides = [1, 1]} : vector<18x8xf32> to vector<2x8xf32>
    %123 = vector.extract_strided_slice %121 {offsets = [2, 0], sizes = [2, 8], strides = [1, 1]} : vector<18x8xf32> to vector<2x8xf32>
    %124 = vector.extract_strided_slice %121 {offsets = [4, 0], sizes = [2, 8], strides = [1, 1]} : vector<18x8xf32> to vector<2x8xf32>
    %125 = vector.extract_strided_slice %121 {offsets = [6, 0], sizes = [2, 8], strides = [1, 1]} : vector<18x8xf32> to vector<2x8xf32>
    %126 = vector.extract_strided_slice %121 {offsets = [8, 0], sizes = [2, 8], strides = [1, 1]} : vector<18x8xf32> to vector<2x8xf32>
    %127 = vector.extract_strided_slice %121 {offsets = [10, 0], sizes = [2, 8], strides = [1, 1]} : vector<18x8xf32> to vector<2x8xf32>
    %128 = vector.extract_strided_slice %121 {offsets = [12, 0], sizes = [2, 8], strides = [1, 1]} : vector<18x8xf32> to vector<2x8xf32>
    %129 = vector.extract_strided_slice %121 {offsets = [14, 0], sizes = [2, 8], strides = [1, 1]} : vector<18x8xf32> to vector<2x8xf32>
    %130 = vector.extract_strided_slice %121 {offsets = [16, 0], sizes = [2, 8], strides = [1, 1]} : vector<18x8xf32> to vector<2x8xf32>
    %131 = tpu.concatenate %122, %123, %124, %125, %126, %127, %128, %129, %130 in 1 : vector<2x8xf32>, vector<2x8xf32>, vector<2x8xf32>, vector<2x8xf32>, vector<2x8xf32>, vector<2x8xf32>, vector<2x8xf32>, vector<2x8xf32>, vector<2x8xf32> -> vector<2x72xf32>
    %c0_13 = arith.constant 0 : index
    %c0_14 = arith.constant 0 : index
    %132 = vector.load %arg5[%c0_13, %c0_14] : memref<72x64xf32, #tpu.memory_space<vmem>>, vector<72x64xf32>
    %cst_15 = arith.constant dense<0.000000e+00> : vector<2x64xf32>
    %133 = tpu.matmul %131, %132, %cst_15 {dimension_numbers = #tpu.dot_dimension_numbers<[1], [0], [0], [1], [0, 0, 1, 1], [], []>} : vector<2x72xf32>, vector<72x64xf32>, vector<2x64xf32> -> vector<2x64xf32>
    %c0_16 = arith.constant 0 : index
    %c0_17 = arith.constant 0 : index
    %134 = vector.load %arg6[%c0_16, %c0_17] : memref<1x64xf32, #tpu.memory_space<vmem>>, vector<1x64xf32>
    %135 = vector.broadcast %134 : vector<1x64xf32> to vector<2x64xf32>
    %136 = arith.addf %133, %135 : vector<2x64xf32>
    %cst_18 = arith.constant 0.000000e+00 : f32
    %137 = vector.broadcast %cst_18 : f32 to vector<2x64xf32>
    %138 = arith.cmpf oge, %136, %137 : vector<2x64xf32>
    %139 = vector.broadcast %2 : f32 to vector<2x64xf32>
    %140 = arith.mulf %139, %136 : vector<2x64xf32>
    %141 = arith.select %138, %136, %140 : vector<2x64xi1>, vector<2x64xf32>
    %c0_19 = arith.constant 0 : index
    %c0_20 = arith.constant 0 : index
    %142 = vector.load %arg7[%c0_19, %c0_20] : memref<64x128xf32, #tpu.memory_space<vmem>>, vector<64x128xf32>
    %cst_21 = arith.constant dense<0.000000e+00> : vector<2x128xf32>
    %143 = tpu.matmul %141, %142, %cst_21 {dimension_numbers = #tpu.dot_dimension_numbers<[1], [0], [0], [1], [0, 0, 1, 1], [], []>} : vector<2x64xf32>, vector<64x128xf32>, vector<2x128xf32> -> vector<2x128xf32>
    %c0_22 = arith.constant 0 : index
    %c0_23 = arith.constant 0 : index
    %144 = vector.load %arg8[%c0_22, %c0_23] : memref<1x128xf32, #tpu.memory_space<vmem>>, vector<1x128xf32>
    %145 = vector.broadcast %144 : vector<1x128xf32> to vector<2x128xf32>
    %146 = arith.addf %143, %145 : vector<2x128xf32>
    %c0_24 = arith.constant 0 : index
    %c0_25 = arith.constant 0 : index
    %147 = vector.load %arg10[%c0_24, %c0_25] : memref<2x128xf32, #tpu.memory_space<vmem>>, vector<2x128xf32>
    tpu.vector_store %arg10[%c0_24, %c0_25], %146 {strides = array<i32>} : memref<2x128xf32, #tpu.memory_space<vmem>>, vector<2x128xf32>,
    return
  }
}

</mosaic_0001>

<llo_original>
// kernel: encoder_forward.1
$region0: #{encoder_forward.1}
  #allocation0 [shape = 'u32[]', space=smem, size = 0x4, offset = 0x4, fixed_abs, tag = 'smem constant byte address 0x4 - core index']
  #allocation1 [shape = 'u32[144,128]{1,0:T(1,128)}', space=vmem, size = 0x12000, scoped, tag = 'internal scratch']
  %s0 = inlined_call_operand.vmem [shape: f32[416,36], index: 0, kind: input, shape index: {}]
  %s1 = inlined_call_operand.vmem [shape: f32[36,8], index: 1, kind: input, shape index: {}]
  %s2 = inlined_call_operand.vmem [shape: f32[1,8], index: 2, kind: input, shape index: {}]
  %s3 = inlined_call_operand.vmem [shape: f32[72,8], index: 3, kind: input, shape index: {}]
  %s4 = inlined_call_operand.vmem [shape: f32[1,8], index: 4, kind: input, shape index: {}]
  %s5 = inlined_call_operand.vmem [shape: f32[72,64], index: 5, kind: input, shape index: {}]
  %s6 = inlined_call_operand.vmem [shape: f32[1,64], index: 6, kind: input, shape index: {}]
  %s7 = inlined_call_operand.vmem [shape: f32[64,128], index: 7, kind: input, shape index: {}]
  %s8 = inlined_call_operand.vmem [shape: f32[1,128], index: 8, kind: input, shape index: {}]
  %s9 = inlined_call_operand.vmem [shape: f32[3], index: 9, kind: input, shape index: {}]
  %s10 = inlined_call_operand.hbm [shape: f32[2,128], index: 10, kind: output, shape index: {}]
  %s11 = sld [smem:[#allocation0]]
  $region54: #{encoder_forward.1} parent=0
    _
  %s13 = ssub.s32 1, %s11
  %s14 = scalar_select 0, %s13, %s11
  $region1: #{encoder_forward.1} parent=0
    #allocation2 [shape = 'u8[512]{0}', space=smem, size = 0x200, scoped, tag = 'input window, operand 9, single buffered']
    #allocation3 [shape = 's32[1]{0}', space=sflag, size = 0x4, scoped, tag = 'scoped memory for encoder_forward.1']
    #allocation4 [shape = 's32[1]{0}', space=sflag, size = 0x4, scoped, tag = 'scoped memory for encoder_forward.1']
    #allocation5 [shape = 'u8[1024]{0}', space=vmem, size = 0x400, scoped, tag = 'output window, operand 0, single buffered']
    %15 = vsyncpa [#allocation4], 0
    %16 = vsyncpa [#allocation3], 0
    // Predicated region
    $region2: #{encoder_forward.1} parent=1 // pred_check
      _
    $region3: #{encoder_forward.1} parent=1 // pred_check_branch
      %18 = sbr.rel (0) target = $region5
    $region4: #{encoder_forward.1} parent=1 // pred_region
      _
    $region5: #{encoder_forward.1} parent=1 // pred_fallthru
      _
    // Predicated region
    $region6: #{encoder_forward.1} parent=1 // pred_check
      _
    $region7: #{encoder_forward.1} parent=1 // pred_check_branch
      %20 = sbr.rel (0) target = $region9
    $region8: #{encoder_forward.1} parent=1 // pred_region
      _
    $region9: #{encoder_forward.1} parent=1 // pred_fallthru
      _
    // Predicated region
    $region10: #{encoder_forward.1} parent=1 // pred_check
      _
    $region11: #{encoder_forward.1} parent=1 // pred_check_branch
      %22 = sbr.rel (0) target = $region13
    $region12: #{encoder_forward.1} parent=1 // pred_region
      _
    $region13: #{encoder_forward.1} parent=1 // pred_fallthru
      _
    // Predicated region
    $region14: #{encoder_forward.1} parent=1 // pred_check
      _
    $region15: #{encoder_forward.1} parent=1 // pred_check_branch
      %24 = sbr.rel (0) target = $region17
    $region16: #{encoder_forward.1} parent=1 // pred_region
      _
    $region17: #{encoder_forward.1} parent=1 // pred_fallthru
      _
    // Predicated region
    $region18: #{encoder_forward.1} parent=1 // pred_check
      _
    $region19: #{encoder_forward.1} parent=1 // pred_check_branch
      %26 = sbr.rel (0) target = $region21
    $region20: #{encoder_forward.1} parent=1 // pred_region
      _
    $region21: #{encoder_forward.1} parent=1 // pred_fallthru
      _
    // Predicated region
    $region22: #{encoder_forward.1} parent=1 // pred_check
      _
    $region23: #{encoder_forward.1} parent=1 // pred_check_branch
      %28 = sbr.rel (0) target = $region25
    $region24: #{encoder_forward.1} parent=1 // pred_region
      _
    $region25: #{encoder_forward.1} parent=1 // pred_fallthru
      _
    // Predicated region
    $region26: #{encoder_forward.1} parent=1 // pred_check
      _
    $region27: #{encoder_forward.1} parent=1 // pred_check_branch
      %30 = sbr.rel (0) target = $region29
    $region28: #{encoder_forward.1} parent=1 // pred_region
      _
    $region29: #{encoder_forward.1} parent=1 // pred_fallthru
      _
    // Predicated region
    $region30: #{encoder_forward.1} parent=1 // pred_check
      _
    $region31: #{encoder_forward.1} parent=1 // pred_check_branch
      %32 = sbr.rel (0) target = $region33
    $region32: #{encoder_forward.1} parent=1 // pred_region
      _
    $region33: #{encoder_forward.1} parent=1 // pred_fallthru
      _
    // Predicated region
    $region34: #{encoder_forward.1} parent=1 // pred_check
      _
    $region35: #{encoder_forward.1} parent=1 // pred_check_branch
      %34 = sbr.rel (0) target = $region37
    $region36: #{encoder_forward.1} parent=1 // pred_region
      _
    $region37: #{encoder_forward.1} parent=1 // pred_fallthru
      _
    // Predicated region
    $region38: #{encoder_forward.1} parent=1 // pred_check
      _
    $region39: #{encoder_forward.1} parent=1 // pred_check_branch
      %36 = sbr.rel (0) target = $region41
    $region40: #{encoder_forward.1} parent=1 // pred_region
      %s38 = ssub.s32 16, 16
      %39 = vsyncadd [#allocation4], %s38
      %s41 = sshll.u32 %s9, 4
      %s42 = int_to_ptr.vmem [resolvable:$true] %s41
      %44 = dma.vmem_to_smem %s42, 16, [#allocation2], [#allocation4]
    $region41: #{encoder_forward.1} parent=1 // pred_fallthru
      _
    // Predicated region
    $region42: #{encoder_forward.1} parent=1 // pred_check
      _
    $region43: #{encoder_forward.1} parent=1 // pred_check_branch
      %46 = sbr.rel (0) target = $region45
    $region44: #{encoder_forward.1} parent=1 // pred_region
      %47 = dma.done [#allocation4], 16
    $region45: #{encoder_forward.1} parent=1 // pred_fallthru
      _
    %48 = sfence
    %s49 = sld [smem:[#allocation2]]
    %s50 = sld [smem:[#allocation2 + $0x1]]
    %s51 = sld [smem:[#allocation2 + $0x2]]
    %v52 = vld [vmem:[%s0] sm:$0xff]
    %v53 = vld [vmem:[%s0 + $0x8] sm:$0xff]
    %v54 = vld [vmem:[%s0 + $0x10] sm:$0xff]
    %v55 = vld [vmem:[%s0 + $0x18] sm:$0xff]
    %v56 = vld [vmem:[%s0 + $0x20] sm:$0xff]
    %v57 = vld [vmem:[%s0 + $0x28] sm:$0xff]
    %v58 = vld [vmem:[%s0 + $0x30] sm:$0xff]
    %v59 = vld [vmem:[%s0 + $0x38] sm:$0xff]
    %v60 = vld [vmem:[%s0 + $0x40] sm:$0xff]
    %v61 = vld [vmem:[%s0 + $0x48] sm:$0xff]
    %v62 = vld [vmem:[%s0 + $0x50] sm:$0xff]
    %v63 = vld [vmem:[%s0 + $0x58] sm:$0xff]
    %v64 = vld [vmem:[%s0 + $0x60] sm:$0xff]
    %v65 = vld [vmem:[%s0 + $0x68] sm:$0xff]
    %v66 = vld [vmem:[%s0 + $0x70] sm:$0xff]
    %v67 = vld [vmem:[%s0 + $0x78] sm:$0xff]
    %v68 = vld [vmem:[%s0 + $0x80] sm:$0xff]
    %v69 = vld [vmem:[%s0 + $0x88] sm:$0xff]
    %v70 = vld [vmem:[%s0 + $0x90] sm:$0xff]
    %v71 = vld [vmem:[%s0 + $0x98] sm:$0xff]
    %v72 = vld [vmem:[%s0 + $0xa0] sm:$0xff]
    %v73 = vld [vmem:[%s0 + $0xa8] sm:$0xff]
    %v74 = vld [vmem:[%s0 + $0xb0] sm:$0xff]
    %v75 = vld [vmem:[%s0 + $0xb8] sm:$0xff]
    %v76 = vld [vmem:[%s0 + $0xc0] sm:$0xff]
    %v77 = vld [vmem:[%s0 + $0xc8] sm:$0xff]
    %v78 = vld [vmem:[%s0 + $0xd0] sm:$0xff]
    %v79 = vld [vmem:[%s0 + $0xd8] sm:$0xff]
    %v80 = vld [vmem:[%s0 + $0xe0] sm:$0xff]
    %v81 = vld [vmem:[%s0 + $0xe8] sm:$0xff]
    %v82 = vld [vmem:[%s0 + $0xf0] sm:$0xff]
    %v83 = vld [vmem:[%s0 + $0xf8] sm:$0xff]
    %v84 = vld [vmem:[%s0 + $0x100] sm:$0xff]
    %v85 = vld [vmem:[%s0 + $0x108] sm:$0xff]
    %v86 = vld [vmem:[%s0 + $0x110] sm:$0xff]
    %v87 = vld [vmem:[%s0 + $0x118] sm:$0xff]
    %v88 = vld [vmem:[%s0 + $0x120] sm:$0xff]
    %v89 = vld [vmem:[%s0 + $0x128] sm:$0xff]
    %v90 = vld [vmem:[%s0 + $0x130] sm:$0xff]
    %v91 = vld [vmem:[%s0 + $0x138] sm:$0xff]
    %v92 = vld [vmem:[%s0 + $0x140] sm:$0xff]
    %v93 = vld [vmem:[%s0 + $0x148] sm:$0xff]
    %v94 = vld [vmem:[%s0 + $0x150] sm:$0xff]
    %v95 = vld [vmem:[%s0 + $0x158] sm:$0xff]
    %v96 = vld [vmem:[%s0 + $0x160] sm:$0xff]
    %v97 = vld [vmem:[%s0 + $0x168] sm:$0xff]
    %v98 = vld [vmem:[%s0 + $0x170] sm:$0xff]
    %v99 = vld [vmem:[%s0 + $0x178] sm:$0xff]
    %v100 = vld [vmem:[%s0 + $0x180] sm:$0xff]
    %v101 = vld [vmem:[%s0 + $0x188] sm:$0xff]
    %v102 = vld [vmem:[%s0 + $0x190] sm:$0xff]
    %v103 = vld [vmem:[%s0 + $0x198] sm:$0xff]
    %v104 = vld [vmem:[%s1] sm:$0xff]
    %v105 = vld [vmem:[%s1 + $0x8] sm:$0xff]
    %v106 = vld [vmem:[%s1 + $0x10] sm:$0xff]
    %v107 = vld [vmem:[%s1 + $0x18] sm:$0xff]
    %v108 = vld [vmem:[%s1 + $0x20] sm:$0xf]
    %v109 = vld [vmem:[%s2] sm:$0x1]
    %v111 = vlaneseq
    %v112 = vshrl.u32 %v111, 7
    %v113 = vsub.s32 0, %v112
    %v114 = vrot.slane %v109, %v113
    %vm116 = vcmask 293888
    %v118 = vsel %vm116, %v52, 0
    %v121 = vsel %vm116, %v53, 0
    %v124 = vsel %vm116, %v54, 0
    %v127 = vsel %vm116, %v55, 0
    %v130 = vsel %vm116, %v56, 0
    %v133 = vsel %vm116, %v57, 0
    %v136 = vsel %vm116, %v58, 0
    %v139 = vsel %vm116, %v59, 0
    %v142 = vsel %vm116, %v60, 0
    %v145 = vsel %vm116, %v61, 0
    %v148 = vsel %vm116, %v62, 0
    %v151 = vsel %vm116, %v63, 0
    %v154 = vsel %vm116, %v64, 0
    %v157 = vsel %vm116, %v65, 0
    %v160 = vsel %vm116, %v66, 0
    %v163 = vsel %vm116, %v67, 0
    %v166 = vsel %vm116, %v68, 0
    %v169 = vsel %vm116, %v69, 0
    %v172 = vsel %vm116, %v70, 0
    %v175 = vsel %vm116, %v71, 0
    %v178 = vsel %vm116, %v72, 0
    %v181 = vsel %vm116, %v73, 0
    %v184 = vsel %vm116, %v74, 0
    %v187 = vsel %vm116, %v75, 0
    %v190 = vsel %vm116, %v76, 0
    %v193 = vsel %vm116, %v77, 0
    %v196 = vsel %vm116, %v78, 0
    %v199 = vsel %vm116, %v79, 0
    %v202 = vsel %vm116, %v80, 0
    %v205 = vsel %vm116, %v81, 0
    %v208 = vsel %vm116, %v82, 0
    %v211 = vsel %vm116, %v83, 0
    %v214 = vsel %vm116, %v84, 0
    %v217 = vsel %vm116, %v85, 0
    %v220 = vsel %vm116, %v86, 0
    %v223 = vsel %vm116, %v87, 0
    %v226 = vsel %vm116, %v88, 0
    %v229 = vsel %vm116, %v89, 0
    %v232 = vsel %vm116, %v90, 0
    %v235 = vsel %vm116, %v91, 0
    %v238 = vsel %vm116, %v92, 0
    %v241 = vsel %vm116, %v93, 0
    %v244 = vsel %vm116, %v94, 0
    %v247 = vsel %vm116, %v95, 0
    %v250 = vsel %vm116, %v96, 0
    %v253 = vsel %vm116, %v97, 0
    %v256 = vsel %vm116, %v98, 0
    %v259 = vsel %vm116, %v99, 0
    %v262 = vsel %vm116, %v100, 0
    %v265 = vsel %vm116, %v101, 0
    %v268 = vsel %vm116, %v102, 0
    %v271 = vsel %vm116, %v103, 0
    %vm273 = vcmask 1043456
    %v275 = vsel %vm273, %v108, 0
    %277 = vmatprep.subr.mxu0 0.0
    %278 = vmatpush1.msra.mxu0 0.0
    %279 = vmatprep.subr.mxu0 0.0
    %280 = vmatpush1.msra.mxu0 0.0
    %281 = vmatprep.subr.mxu0 0.0
    %282 = vmatpush1.msra.mxu0 0.0
    %283 = vmatprep.subr.mxu0 0.0
    %284 = vmatpush1.msra.mxu0 0.0
    %285 = vmatprep.subr.mxu0 0.0
    %286 = vmatpush1.msra.mxu0 0.0
    %287 = vmatprep.subr.mxu0 0.0
    %288 = vmatpush1.msra.mxu0 0.0
    %289 = vmatprep.subr.mxu0 0.0
    %290 = vmatpush1.msra.mxu0 0.0
    %291 = vmatprep.subr.mxu0 0.0
    %292 = vmatpush1.msra.mxu0 0.0
    %293 = vmatprep.subr.mxu0 0.0
    %294 = vmatpush1.msra.mxu0 0.0
    %295 = vmatprep.subr.mxu0 0.0
    %296 = vmatpush1.msra.mxu0 0.0
    %297 = vmatprep.subr.mxu0 0.0
    %298 = vmatpush1.msra.mxu0 0.0
    %299 = vmatprep.subr.mxu0 0.0
    %300 = vmatpush1.msra.mxu0 %v275
    %301 = vmatprep.subr.mxu0 0.0
    %302 = vmatpush1.msra.mxu0 %v107
    %303 = vmatprep.subr.mxu0 0.0
    %304 = vmatpush1.msra.mxu0 %v106
    %305 = vmatprep.subr.mxu0 0.0
    %306 = vmatpush1.msra.mxu0 %v105
    %307 = vmatprep.subr.mxu0 0.0
    %308 = vmatpush1.msra.mxu0 %v104
    %309 = vmatprep.subr.mxu0 0.0
    %310 = vmatpush2.msra.mxu0 0.0
    %311 = vmatprep.subr.mxu0 0.0
    %312 = vmatpush2.msra.mxu0 0.0
    %313 = vmatprep.subr.mxu0 0.0
    %314 = vmatpush2.msra.mxu0 0.0
    %315 = vmatprep.subr.mxu0 0.0
    %316 = vmatpush2.msra.mxu0 0.0
    %317 = vmatprep.subr.mxu0 0.0
    %318 = vmatpush2.msra.mxu0 0.0
    %319 = vmatprep.subr.mxu0 0.0
    %320 = vmatpush2.msra.mxu0 0.0
    %321 = vmatprep.subr.mxu0 0.0
    %322 = vmatpush2.msra.mxu0 0.0
    %323 = vmatprep.subr.mxu0 0.0
    %324 = vmatpush2.msra.mxu0 0.0
    %325 = vmatprep.subr.mxu0 0.0
    %326 = vmatpush2.msra.mxu0 0.0
    %327 = vmatprep.subr.mxu0 0.0
    %328 = vmatpush2.msra.mxu0 0.0
    %329 = vmatprep.subr.mxu0 0.0
    %330 = vmatpush2.msra.mxu0 0.0
    %331 = vmatprep.subr.mxu0 0.0
    %332 = vmatpush2.msra.mxu0 0.0
    %333 = vmatprep.subr.mxu0 0.0
    %334 = vmatpush2.msra.mxu0 0.0
    %335 = vmatprep.subr.mxu0 0.0
    %336 = vmatpush2.msra.mxu0 0.0
    %337 = vmatprep.subr.mxu0 0.0
    %338 = vmatpush2.msra.mxu0 0.0
    %339 = vmatprep.subr.mxu0 0.0
    %340 = vmatpush2.msra.mxu0 0.0
    %341 = vmatprep.mubr.f32.mxu0 0.0
    %342 = vmatmul.mubr.f32.gmra.mxu0 %v118
    %v343 = vpop.f32.mrf.mxu0
    %v344 = vadd.f32 %v114, %v343
    %v345 = vpop.f32.mrf.mxu0
    %346 = vmatprep.mubr.f32.mxu0 0.0
    %347 = vmatmul.mubr.f32.gmra.mxu0 %v121
    %v348 = vpop.f32.mrf.mxu0
    %v349 = vadd.f32 %v114, %v348
    %v350 = vpop.f32.mrf.mxu0
    %351 = vmatprep.mubr.f32.mxu0 0.0
    %352 = vmatmul.mubr.f32.gmra.mxu0 %v124
    %v353 = vpop.f32.mrf.mxu0
    %v354 = vadd.f32 %v114, %v353
    %v355 = vpop.f32.mrf.mxu0
    %356 = vmatprep.mubr.f32.mxu0 0.0
    %357 = vmatmul.mubr.f32.gmra.mxu0 %v127
    %v358 = vpop.f32.mrf.mxu0
    %v359 = vadd.f32 %v114, %v358
    %v360 = vpop.f32.mrf.mxu0
    %361 = vmatprep.mubr.f32.mxu0 0.0
    %362 = vmatmul.mubr.f32.gmra.mxu0 %v130
    %v363 = vpop.f32.mrf.mxu0
    %v364 = vadd.f32 %v114, %v363
    %v365 = vpop.f32.mrf.mxu0
    %366 = vmatprep.mubr.f32.mxu0 0.0
    %367 = vmatmul.mubr.f32.gmra.mxu0 %v133
    %v368 = vpop.f32.mrf.mxu0
    %v369 = vadd.f32 %v114, %v368
    %v370 = vpop.f32.mrf.mxu0
    %371 = vmatprep.mubr.f32.mxu0 0.0
    %372 = vmatmul.mubr.f32.gmra.mxu0 %v136
    %v373 = vpop.f32.mrf.mxu0
    %v374 = vadd.f32 %v114, %v373
    %v375 = vpop.f32.mrf.mxu0
    %376 = vmatprep.mubr.f32.mxu0 0.0
    %377 = vmatmul.mubr.f32.gmra.mxu0 %v139
    %v378 = vpop.f32.mrf.mxu0
    %v379 = vadd.f32 %v114, %v378
    %v380 = vpop.f32.mrf.mxu0
    %381 = vmatprep.mubr.f32.mxu0 0.0
    %382 = vmatmul.mubr.f32.gmra.mxu0 %v142
    %v383 = vpop.f32.mrf.mxu0
    %v384 = vadd.f32 %v114, %v383
    %v385 = vpop.f32.mrf.mxu0
    %386 = vmatprep.mubr.f32.mxu0 0.0
    %387 = vmatmul.mubr.f32.gmra.mxu0 %v145
    %v388 = vpop.f32.mrf.mxu0
    %v389 = vadd.f32 %v114, %v388
    %v390 = vpop.f32.mrf.mxu0
    %391 = vmatprep.mubr.f32.mxu0 0.0
    %392 = vmatmul.mubr.f32.gmra.mxu0 %v148
    %v393 = vpop.f32.mrf.mxu0
    %v394 = vadd.f32 %v114, %v393
    %v395 = vpop.f32.mrf.mxu0
    %396 = vmatprep.mubr.f32.mxu0 0.0
    %397 = vmatmul.mubr.f32.gmra.mxu0 %v151
    %v398 = vpop.f32.mrf.mxu0
    %v399 = vadd.f32 %v114, %v398
    %v400 = vpop.f32.mrf.mxu0
    %401 = vmatprep.mubr.f32.mxu0 0.0
    %402 = vmatmul.mubr.f32.gmra.mxu0 %v154
    %v403 = vpop.f32.mrf.mxu0
    %v404 = vadd.f32 %v114, %v403
    %v405 = vpop.f32.mrf.mxu0
    %406 = vmatprep.mubr.f32.mxu0 0.0
    %407 = vmatmul.mubr.f32.gmra.mxu0 %v157
    %v408 = vpop.f32.mrf.mxu0
    %v409 = vadd.f32 %v114, %v408
    %v410 = vpop.f32.mrf.mxu0
    %411 = vmatprep.mubr.f32.mxu0 0.0
    %412 = vmatmul.mubr.f32.gmra.mxu0 %v160
    %v413 = vpop.f32.mrf.mxu0
    %v414 = vadd.f32 %v114, %v413
    %v415 = vpop.f32.mrf.mxu0
    %416 = vmatprep.mubr.f32.mxu0 0.0
    %417 = vmatmul.mubr.f32.gmra.mxu0 %v163
    %v418 = vpop.f32.mrf.mxu0
    %v419 = vadd.f32 %v114, %v418
    %v420 = vpop.f32.mrf.mxu0
    %421 = vmatprep.mubr.f32.mxu0 0.0
    %422 = vmatmul.mubr.f32.gmra.mxu0 %v166
    %v423 = vpop.f32.mrf.mxu0
    %v424 = vadd.f32 %v114, %v423
    %v425 = vpop.f32.mrf.mxu0
    %426 = vmatprep.mubr.f32.mxu0 0.0
    %427 = vmatmul.mubr.f32.gmra.mxu0 %v169
    %v428 = vpop.f32.mrf.mxu0
    %v429 = vadd.f32 %v114, %v428
    %v430 = vpop.f32.mrf.mxu0
    %431 = vmatprep.mubr.f32.mxu0 0.0
    %432 = vmatmul.mubr.f32.gmra.mxu0 %v172
    %v433 = vpop.f32.mrf.mxu0
    %v434 = vadd.f32 %v114, %v433
    %v435 = vpop.f32.mrf.mxu0
    %436 = vmatprep.mubr.f32.mxu0 0.0
    %437 = vmatmul.mubr.f32.gmra.mxu0 %v175
    %v438 = vpop.f32.mrf.mxu0
    %v439 = vadd.f32 %v114, %v438
    %v440 = vpop.f32.mrf.mxu0
    %441 = vmatprep.mubr.f32.mxu0 0.0
    %442 = vmatmul.mubr.f32.gmra.mxu0 %v178
    %v443 = vpop.f32.mrf.mxu0
    %v444 = vadd.f32 %v114, %v443
    %v445 = vpop.f32.mrf.mxu0
    %446 = vmatprep.mubr.f32.mxu0 0.0
    %447 = vmatmul.mubr.f32.gmra.mxu0 %v181
    %v448 = vpop.f32.mrf.mxu0
    %v449 = vadd.f32 %v114, %v448
    %v450 = vpop.f32.mrf.mxu0
    %451 = vmatprep.mubr.f32.mxu0 0.0
    %452 = vmatmul.mubr.f32.gmra.mxu0 %v184
    %v453 = vpop.f32.mrf.mxu0
    %v454 = vadd.f32 %v114, %v453
    %v455 = vpop.f32.mrf.mxu0
    %456 = vmatprep.mubr.f32.mxu0 0.0
    %457 = vmatmul.mubr.f32.gmra.mxu0 %v187
    %v458 = vpop.f32.mrf.mxu0
    %v459 = vadd.f32 %v114, %v458
    %v460 = vpop.f32.mrf.mxu0
    %461 = vmatprep.mubr.f32.mxu0 0.0
    %462 = vmatmul.mubr.f32.gmra.mxu0 %v190
    %v463 = vpop.f32.mrf.mxu0
    %v464 = vadd.f32 %v114, %v463
    %v465 = vpop.f32.mrf.mxu0
    %466 = vmatprep.mubr.f32.mxu0 0.0
    %467 = vmatmul.mubr.f32.gmra.mxu0 %v193
    %v468 = vpop.f32.mrf.mxu0
    %v469 = vadd.f32 %v114, %v468
    %v470 = vpop.f32.mrf.mxu0
    %471 = vmatprep.mubr.f32.mxu0 0.0
    %472 = vmatmul.mubr.f32.gmra.mxu0 %v196
    %v473 = vpop.f32.mrf.mxu0
    %v474 = vadd.f32 %v114, %v473
    %v475 = vpop.f32.mrf.mxu0
    %476 = vmatprep.mubr.f32.mxu0 0.0
    %477 = vmatmul.mubr.f32.gmra.mxu0 %v199
    %v478 = vpop.f32.mrf.mxu0
    %v479 = vadd.f32 %v114, %v478
    %v480 = vpop.f32.mrf.mxu0
    %481 = vmatprep.mubr.f32.mxu0 0.0
    %482 = vmatmul.mubr.f32.gmra.mxu0 %v202
    %v483 = vpop.f32.mrf.mxu0
    %v484 = vadd.f32 %v114, %v483
    %v485 = vpop.f32.mrf.mxu0
    %486 = vmatprep.mubr.f32.mxu0 0.0
    %487 = vmatmul.mubr.f32.gmra.mxu0 %v205
    %v488 = vpop.f32.mrf.mxu0
    %v489 = vadd.f32 %v114, %v488
    %v490 = vpop.f32.mrf.mxu0
    %491 = vmatprep.mubr.f32.mxu0 0.0
    %492 = vmatmul.mubr.f32.gmra.mxu0 %v208
    %v493 = vpop.f32.mrf.mxu0
    %v494 = vadd.f32 %v114, %v493
    %v495 = vpop.f32.mrf.mxu0
    %496 = vmatprep.mubr.f32.mxu0 0.0
    %497 = vmatmul.mubr.f32.gmra.mxu0 %v211
    %v498 = vpop.f32.mrf.mxu0
    %v499 = vadd.f32 %v114, %v498
    %v500 = vpop.f32.mrf.mxu0
    %501 = vmatprep.mubr.f32.mxu0 0.0
    %502 = vmatmul.mubr.f32.gmra.mxu0 %v214
    %v503 = vpop.f32.mrf.mxu0
    %v504 = vadd.f32 %v114, %v503
    %v505 = vpop.f32.mrf.mxu0
    %506 = vmatprep.mubr.f32.mxu0 0.0
    %507 = vmatmul.mubr.f32.gmra.mxu0 %v217
    %v508 = vpop.f32.mrf.mxu0
    %v509 = vadd.f32 %v114, %v508
    %v510 = vpop.f32.mrf.mxu0
    %511 = vmatprep.mubr.f32.mxu0 0.0
    %512 = vmatmul.mubr.f32.gmra.mxu0 %v220
    %v513 = vpop.f32.mrf.mxu0
    %v514 = vadd.f32 %v114, %v513
    %v515 = vpop.f32.mrf.mxu0
    %516 = vmatprep.mubr.f32.mxu0 0.0
    %517 = vmatmul.mubr.f32.gmra.mxu0 %v223
    %v518 = vpop.f32.mrf.mxu0
    %v519 = vadd.f32 %v114, %v518
    %v520 = vpop.f32.mrf.mxu0
    %521 = vmatprep.mubr.f32.mxu0 0.0
    %522 = vmatmul.mubr.f32.gmra.mxu0 %v226
    %v523 = vpop.f32.mrf.mxu0
    %v524 = vadd.f32 %v114, %v523
    %v525 = vpop.f32.mrf.mxu0
    %526 = vmatprep.mubr.f32.mxu0 0.0
    %527 = vmatmul.mubr.f32.gmra.mxu0 %v229
    %v528 = vpop.f32.mrf.mxu0
    %v529 = vadd.f32 %v114, %v528
    %v530 = vpop.f32.mrf.mxu0
    %531 = vmatprep.mubr.f32.mxu0 0.0
    %532 = vmatmul.mubr.f32.gmra.mxu0 %v232
    %v533 = vpop.f32.mrf.mxu0
    %v534 = vadd.f32 %v114, %v533
    %v535 = vpop.f32.mrf.mxu0
    %536 = vmatprep.mubr.f32.mxu0 0.0
    %537 = vmatmul.mubr.f32.gmra.mxu0 %v235
    %v538 = vpop.f32.mrf.mxu0
    %v539 = vadd.f32 %v114, %v538
    %v540 = vpop.f32.mrf.mxu0
    %541 = vmatprep.mubr.f32.mxu0 0.0
    %542 = vmatmul.mubr.f32.gmra.mxu0 %v238
    %v543 = vpop.f32.mrf.mxu0
    %v544 = vadd.f32 %v114, %v543
    %v545 = vpop.f32.mrf.mxu0
    %546 = vmatprep.mubr.f32.mxu0 0.0
    %547 = vmatmul.mubr.f32.gmra.mxu0 %v241
    %v548 = vpop.f32.mrf.mxu0
    %v549 = vadd.f32 %v114, %v548
    %v550 = vpop.f32.mrf.mxu0
    %551 = vmatprep.mubr.f32.mxu0 0.0
    %552 = vmatmul.mubr.f32.gmra.mxu0 %v244
    %v553 = vpop.f32.mrf.mxu0
    %v554 = vadd.f32 %v114, %v553
    %v555 = vpop.f32.mrf.mxu0
    %556 = vmatprep.mubr.f32.mxu0 0.0
    %557 = vmatmul.mubr.f32.gmra.mxu0 %v247
    %v558 = vpop.f32.mrf.mxu0
    %v559 = vadd.f32 %v114, %v558
    %v560 = vpop.f32.mrf.mxu0
    %561 = vmatprep.mubr.f32.mxu0 0.0
    %562 = vmatmul.mubr.f32.gmra.mxu0 %v250
    %v563 = vpop.f32.mrf.mxu0
    %v564 = vadd.f32 %v114, %v563
    %v565 = vpop.f32.mrf.mxu0
    %566 = vmatprep.mubr.f32.mxu0 0.0
    %567 = vmatmul.mubr.f32.gmra.mxu0 %v253
    %v568 = vpop.f32.mrf.mxu0
    %v569 = vadd.f32 %v114, %v568
    %v570 = vpop.f32.mrf.mxu0
    %571 = vmatprep.mubr.f32.mxu0 0.0
    %572 = vmatmul.mubr.f32.gmra.mxu0 %v256
    %v573 = vpop.f32.mrf.mxu0
    %v574 = vadd.f32 %v114, %v573
    %v575 = vpop.f32.mrf.mxu0
    %576 = vmatprep.mubr.f32.mxu0 0.0
    %577 = vmatmul.mubr.f32.gmra.mxu0 %v259
    %v578 = vpop.f32.mrf.mxu0
    %v579 = vadd.f32 %v114, %v578
    %v580 = vpop.f32.mrf.mxu0
    %581 = vmatprep.mubr.f32.mxu0 0.0
    %582 = vmatmul.mubr.f32.gmra.mxu0 %v262
    %v583 = vpop.f32.mrf.mxu0
    %v584 = vadd.f32 %v114, %v583
    %v585 = vpop.f32.mrf.mxu0
    %586 = vmatprep.mubr.f32.mxu0 0.0
    %587 = vmatmul.mubr.f32.gmra.mxu0 %v265
    %v588 = vpop.f32.mrf.mxu0
    %v589 = vadd.f32 %v114, %v588
    %v590 = vpop.f32.mrf.mxu0
    %591 = vmatprep.mubr.f32.mxu0 0.0
    %592 = vmatmul.mubr.f32.gmra.mxu0 %v268
    %v593 = vpop.f32.mrf.mxu0
    %v594 = vadd.f32 %v114, %v593
    %v595 = vpop.f32.mrf.mxu0
    %596 = vmatprep.mubr.f32.mxu0 0.0
    %597 = vmatmul.mubr.f32.gmra.mxu0 %v271
    %v598 = vpop.f32.mrf.mxu0
    %v599 = vadd.f32 %v114, %v598
    %v600 = vpop.f32.mrf.mxu0
    %601 = vdwg.mxu0
    %vm602 = vcmp.ge.f32.partialorder %v344, 0.0
    %vm603 = vcmp.ge.f32.partialorder %v349, 0.0
    %vm604 = vcmp.ge.f32.partialorder %v354, 0.0
    %vm605 = vcmp.ge.f32.partialorder %v359, 0.0
    %vm606 = vcmp.ge.f32.partialorder %v364, 0.0
    %vm607 = vcmp.ge.f32.partialorder %v369, 0.0
    %vm608 = vcmp.ge.f32.partialorder %v374, 0.0
    %vm609 = vcmp.ge.f32.partialorder %v379, 0.0
    %vm610 = vcmp.ge.f32.partialorder %v384, 0.0
    %vm611 = vcmp.ge.f32.partialorder %v389, 0.0
    %vm612 = vcmp.ge.f32.partialorder %v394, 0.0
    %vm613 = vcmp.ge.f32.partialorder %v399, 0.0
    %vm614 = vcmp.ge.f32.partialorder %v404, 0.0
    %vm615 = vcmp.ge.f32.partialorder %v409, 0.0
    %vm616 = vcmp.ge.f32.partialorder %v414, 0.0
    %vm617 = vcmp.ge.f32.partialorder %v419, 0.0
    %vm618 = vcmp.ge.f32.partialorder %v424, 0.0
    %vm619 = vcmp.ge.f32.partialorder %v429, 0.0
    %vm620 = vcmp.ge.f32.partialorder %v434, 0.0
    %vm621 = vcmp.ge.f32.partialorder %v439, 0.0
    %vm622 = vcmp.ge.f32.partialorder %v444, 0.0
    %vm623 = vcmp.ge.f32.partialorder %v449, 0.0
    %vm624 = vcmp.ge.f32.partialorder %v454, 0.0
    %vm625 = vcmp.ge.f32.partialorder %v459, 0.0
    %vm626 = vcmp.ge.f32.partialorder %v464, 0.0
    %vm627 = vcmp.ge.f32.partialorder %v469, 0.0
    %vm628 = vcmp.ge.f32.partialorder %v474, 0.0
    %vm629 = vcmp.ge.f32.partialorder %v479, 0.0
    %vm630 = vcmp.ge.f32.partialorder %v484, 0.0
    %vm631 = vcmp.ge.f32.partialorder %v489, 0.0
    %vm632 = vcmp.ge.f32.partialorder %v494, 0.0
    %vm633 = vcmp.ge.f32.partialorder %v499, 0.0
    %vm634 = vcmp.ge.f32.partialorder %v504, 0.0
    %vm635 = vcmp.ge.f32.partialorder %v509, 0.0
    %vm636 = vcmp.ge.f32.partialorder %v514, 0.0
    %vm637 = vcmp.ge.f32.partialorder %v519, 0.0
    %vm638 = vcmp.ge.f32.partialorder %v524, 0.0
    %vm639 = vcmp.ge.f32.partialorder %v529, 0.0
    %vm640 = vcmp.ge.f32.partialorder %v534, 0.0
    %vm641 = vcmp.ge.f32.partialorder %v539, 0.0
    %vm642 = vcmp.ge.f32.partialorder %v544, 0.0
    %vm643 = vcmp.ge.f32.partialorder %v549, 0.0
    %vm644 = vcmp.ge.f32.partialorder %v554, 0.0
    %vm645 = vcmp.ge.f32.partialorder %v559, 0.0
    %vm646 = vcmp.ge.f32.partialorder %v564, 0.0
    %vm647 = vcmp.ge.f32.partialorder %v569, 0.0
    %vm648 = vcmp.ge.f32.partialorder %v574, 0.0
    %vm649 = vcmp.ge.f32.partialorder %v579, 0.0
    %vm650 = vcmp.ge.f32.partialorder %v584, 0.0
    %vm651 = vcmp.ge.f32.partialorder %v589, 0.0
    %vm652 = vcmp.ge.f32.partialorder %v594, 0.0
    %vm653 = vcmp.ge.f32.partialorder %v599, 0.0
    %v654 = vstv %s49
    %v655 = vmul.f32 %v654, %v344
    %v656 = vmul.f32 %v654, %v349
    %v657 = vmul.f32 %v654, %v354
    %v658 = vmul.f32 %v654, %v359
    %v659 = vmul.f32 %v654, %v364
    %v660 = vmul.f32 %v654, %v369
    %v661 = vmul.f32 %v654, %v374
    %v662 = vmul.f32 %v654, %v379
    %v663 = vmul.f32 %v654, %v384
    %v664 = vmul.f32 %v654, %v389
    %v665 = vmul.f32 %v654, %v394
    %v666 = vmul.f32 %v654, %v399
    %v667 = vmul.f32 %v654, %v404
    %v668 = vmul.f32 %v654, %v409
    %v669 = vmul.f32 %v654, %v414
    %v670 = vmul.f32 %v654, %v419
    %v671 = vmul.f32 %v654, %v424
    %v672 = vmul.f32 %v654, %v429
    %v673 = vmul.f32 %v654, %v434
    %v674 = vmul.f32 %v654, %v439
    %v675 = vmul.f32 %v654, %v444
    %v676 = vmul.f32 %v654, %v449
    %v677 = vmul.f32 %v654, %v454
    %v678 = vmul.f32 %v654, %v459
    %v679 = vmul.f32 %v654, %v464
    %v680 = vmul.f32 %v654, %v469
    %v681 = vmul.f32 %v654, %v474
    %v682 = vmul.f32 %v654, %v479
    %v683 = vmul.f32 %v654, %v484
    %v684 = vmul.f32 %v654, %v489
    %v685 = vmul.f32 %v654, %v494
    %v686 = vmul.f32 %v654, %v499
    %v687 = vmul.f32 %v654, %v504
    %v688 = vmul.f32 %v654, %v509
    %v689 = vmul.f32 %v654, %v514
    %v690 = vmul.f32 %v654, %v519
    %v691 = vmul.f32 %v654, %v524
    %v692 = vmul.f32 %v654, %v529
    %v693 = vmul.f32 %v654, %v534
    %v694 = vmul.f32 %v654, %v539
    %v695 = vmul.f32 %v654, %v544
    %v696 = vmul.f32 %v654, %v549
    %v697 = vmul.f32 %v654, %v554
    %v698 = vmul.f32 %v654, %v559
    %v699 = vmul.f32 %v654, %v564
    %v700 = vmul.f32 %v654, %v569
    %v701 = vmul.f32 %v654, %v574
    %v702 = vmul.f32 %v654, %v579
    %v703 = vmul.f32 %v654, %v584
    %v704 = vmul.f32 %v654, %v589
    %v705 = vmul.f32 %v654, %v594
    %v706 = vmul.f32 %v654, %v599
    %v707 = vsel %vm602, %v344, %v655
    %v708 = vsel %vm603, %v349, %v656
    %v709 = vsel %vm604, %v354, %v657
    %v710 = vsel %vm605, %v359, %v658
    %v711 = vsel %vm606, %v364, %v659
    %v712 = vsel %vm607, %v369, %v660
    %v713 = vsel %vm608, %v374, %v661
    %v714 = vsel %vm609, %v379, %v662
    %v715 = vsel %vm610, %v384, %v663
    %v716 = vsel %vm611, %v389, %v664
    %v717 = vsel %vm612, %v394, %v665
    %v718 = vsel %vm613, %v399, %v666
    %v719 = vsel %vm614, %v404, %v667
    %v720 = vsel %vm615, %v409, %v668
    %v721 = vsel %vm616, %v414, %v669
    %v722 = vsel %vm617, %v419, %v670
    %v723 = vsel %vm618, %v424, %v671
    %v724 = vsel %vm619, %v429, %v672
    %v725 = vsel %vm620, %v434, %v673
    %v726 = vsel %vm621, %v439, %v674
    %v727 = vsel %vm622, %v444, %v675
    %v728 = vsel %vm623, %v449, %v676
    %v729 = vsel %vm624, %v454, %v677
    %v730 = vsel %vm625, %v459, %v678
    %v731 = vsel %vm626, %v464, %v679
    %v732 = vsel %vm627, %v469, %v680
    %v733 = vsel %vm628, %v474, %v681
    %v734 = vsel %vm629, %v479, %v682
    %v735 = vsel %vm630, %v484, %v683
    %v736 = vsel %vm631, %v489, %v684
    %v737 = vsel %vm632, %v494, %v685
    %v738 = vsel %vm633, %v499, %v686
    %v739 = vsel %vm634, %v504, %v687
    %v740 = vsel %vm635, %v509, %v688
    %v741 = vsel %vm636, %v514, %v689
    %v742 = vsel %vm637, %v519, %v690
    %v743 = vsel %vm638, %v524, %v691
    %v744 = vsel %vm639, %v529, %v692
    %v745 = vsel %vm640, %v534, %v693
    %v746 = vsel %vm641, %v539, %v694
    %v747 = vsel %vm642, %v544, %v695
    %v748 = vsel %vm643, %v549, %v696
    %v749 = vsel %vm644, %v554, %v697
    %v750 = vsel %vm645, %v559, %v698
    %v751 = vsel %vm646, %v564, %v699
    %v752 = vsel %vm647, %v569, %v700
    %v753 = vsel %vm648, %v574, %v701
    %v754 = vsel %vm649, %v579, %v702
    %v755 = vsel %vm650, %v584, %v703
    %v756 = vsel %vm651, %v589, %v704
    %v757 = vsel %vm652, %v594, %v705
    %v758 = vsel %vm653, %v599, %v706
    %v759 = vmax.f32 %v707, %v720
    %v760 = vmax.f32 %v708, %v721
    %v761 = vmax.f32 %v709, %v722
    %v762 = vmax.f32 %v710, %v723
    %v763 = vmax.f32 %v711, %v724
    %v764 = vmax.f32 %v712, %v725
    %v765 = vmax.f32 %v713, %v726
    %v766 = vmax.f32 %v714, %v727
    %v767 = vmax.f32 %v715, %v728
    %v768 = vmax.f32 %v716, %v729
    %v769 = vmax.f32 %v717, %v730
    %v770 = vmax.f32 %v718, %v731
    %v771 = vmax.f32 %v719, %v732
    %v772 = vmax.f32 %v733, %v746
    %v773 = vmax.f32 %v734, %v747
    %v774 = vmax.f32 %v735, %v748
    %v775 = vmax.f32 %v736, %v749
    %v776 = vmax.f32 %v737, %v750
    %v777 = vmax.f32 %v738, %v751
    %v778 = vmax.f32 %v739, %v752
    %v779 = vmax.f32 %v740, %v753
    %v780 = vmax.f32 %v741, %v754
    %v781 = vmax.f32 %v742, %v755
    %v782 = vmax.f32 %v743, %v756
    %v783 = vmax.f32 %v744, %v757
    %v784 = vmax.f32 %v745, %v758
    %v785 = vmax.f32 %v759, %v772
    %v786 = vmax.f32 %v760, %v773
    %v787 = vmax.f32 %v761, %v774
    %v788 = vmax.f32 %v762, %v775
    %v789 = vmax.f32 %v763, %v776
    %v790 = vmax.f32 %v764, %v777
    %v791 = vmax.f32 %v765, %v778
    %v792 = vmax.f32 %v766, %v779
    %v793 = vmax.f32 %v767, %v780
    %v794 = vmax.f32 %v768, %v781
    %v795 = vmax.f32 %v769, %v782
    %v796 = vmax.f32 %v770, %v783
    %v797 = vmax.f32 %v771, %v784
    %v799 = vrot.slane %v785, 2
    %800 = vrot.lane.b32.xlu0 %v799, 8
    %v801 = vpop.permute.xlu0 %800
    %v803 = vrot.slane %v785, 4
    %804 = vrot.lane.b32.xlu0 %v803, 16
    %v805 = vpop.permute.xlu0 %804
    %v808 = vrot.slane %v786, 6
    %809 = vrot.lane.b32.xlu0 %v808, 24
    %v810 = vpop.permute.xlu0 %809
    %813 = vrot.lane.b32.xlu0 %v787, 32
    %v814 = vpop.permute.xlu0 %813
    %v816 = vrot.slane %v787, 2
    %817 = vrot.lane.b32.xlu0 %v816, 40
    %v818 = vpop.permute.xlu0 %817
    %v821 = vrot.slane %v788, 4
    %822 = vrot.lane.b32.xlu0 %v821, 48
    %v823 = vpop.permute.xlu0 %822
    %v825 = vrot.slane %v788, 6
    %826 = vrot.lane.b32.xlu0 %v825, 56
    %v827 = vpop.permute.xlu0 %826
    %830 = vrot.lane.b32.xlu0 %v789, 64
    %v831 = vpop.permute.xlu0 %830
    %vm833 = vcmask 64512
    %v834 = vsel %vm833, %v785, %v801
    %vm835 = vcmask 130048
    %v836 = vsel %vm835, %v834, %v805
    %vm837 = vcmask 195584
    %v838 = vsel %vm837, %v836, %v810
    %vm839 = vcmask 261120
    %v840 = vsel %vm839, %v838, %v814
    %vm841 = vcmask 326656
    %v842 = vsel %vm841, %v840, %v818
    %vm843 = vcmask 392192
    %v844 = vsel %vm843, %v842, %v823
    %vm845 = vcmask 457728
    %v846 = vsel %vm845, %v844, %v827
    %vm847 = vcmask 523264
    %v848 = vsel %vm847, %v846, %v831
    %v849 = vrot.slane %v786, 4
    %850 = vrot.lane.b32.xlu0 %v849, 16
    %v851 = vpop.permute.xlu0 %850
    %v853 = vrot.slane %v787, 6
    %854 = vrot.lane.b32.xlu0 %v853, 24
    %v855 = vpop.permute.xlu0 %854
    %v857 = vrot.slane %v789, 4
    %858 = vrot.lane.b32.xlu0 %v857, 48
    %v859 = vpop.permute.xlu0 %858
    %v861 = vrot.slane %v789, 6
    %862 = vrot.lane.b32.xlu0 %v861, 56
    %v863 = vpop.permute.xlu0 %862
    %v865 = vsel %vm835, %v834, %v851
    %v866 = vsel %vm837, %v865, %v855
    %v867 = vsel %vm839, %v866, %v814
    %v868 = vsel %vm841, %v867, %v818
    %v869 = vsel %vm843, %v868, %v859
    %v870 = vsel %vm845, %v869, %v863
    %v871 = vsel %vm847, %v870, %v831
    %v872 = vrot.slane %v786, 2
    %873 = vrot.lane.b32.xlu0 %v872, 8
    %v874 = vpop.permute.xlu0 %873
    %876 = vrot.lane.b32.xlu0 %v788, 32
    %v877 = vpop.permute.xlu0 %876
    %v879 = vrot.slane %v788, 2
    %880 = vrot.lane.b32.xlu0 %v879, 40
    %v881 = vpop.permute.xlu0 %880
    %884 = vrot.lane.b32.xlu0 %v790, 64
    %v885 = vpop.permute.xlu0 %884
    %v887 = vsel %vm833, %v786, %v874
    %v888 = vsel %vm835, %v887, %v851
    %v889 = vsel %vm837, %v888, %v855
    %v890 = vsel %vm839, %v889, %v877
    %v891 = vsel %vm841, %v890, %v881
    %v892 = vsel %vm843, %v891, %v859
    %v893 = vsel %vm845, %v892, %v863
    %v894 = vsel %vm847, %v893, %v885
    %895 = vrot.lane.b32.xlu0 %v879, 8
    %v896 = vpop.permute.xlu0 %895
    %898 = vrot.lane.b32.xlu0 %v857, 16
    %v899 = vpop.permute.xlu0 %898
    %v901 = vrot.slane %v790, 6
    %902 = vrot.lane.b32.xlu0 %v901, 24
    %v903 = vpop.permute.xlu0 %902
    %905 = vrot.lane.b32.xlu0 %v790, 32
    %v906 = vpop.permute.xlu0 %905
    %v908 = vrot.slane %v790, 2
    %909 = vrot.lane.b32.xlu0 %v908, 40
    %v910 = vpop.permute.xlu0 %909
    %v913 = vrot.slane %v792, 4
    %914 = vrot.lane.b32.xlu0 %v913, 48
    %v915 = vpop.permute.xlu0 %914
    %v917 = vrot.slane %v792, 6
    %918 = vrot.lane.b32.xlu0 %v917, 56
    %v919 = vpop.permute.xlu0 %918
    %921 = vrot.lane.b32.xlu0 %v792, 64
    %v922 = vpop.permute.xlu0 %921
    %v924 = vsel %vm833, %v788, %v896
    %v925 = vsel %vm835, %v924, %v899
    %v926 = vsel %vm837, %v925, %v903
    %v927 = vsel %vm839, %v926, %v906
    %v928 = vsel %vm841, %v927, %v910
    %v929 = vsel %vm843, %v928, %v915
    %v930 = vsel %vm845, %v929, %v919
    %v931 = vsel %vm847, %v930, %v922
    %v932 = vrot.slane %v789, 2
    %933 = vrot.lane.b32.xlu0 %v932, 8
    %v934 = vpop.permute.xlu0 %933
    %937 = vrot.lane.b32.xlu0 %v791, 32
    %v938 = vpop.permute.xlu0 %937
    %v940 = vrot.slane %v791, 2
    %941 = vrot.lane.b32.xlu0 %v940, 40
    %v942 = vpop.permute.xlu0 %941
    %945 = vrot.lane.b32.xlu0 %v793, 64
    %v946 = vpop.permute.xlu0 %945
    %v948 = vsel %vm833, %v789, %v934
    %v949 = vsel %vm835, %v948, %v899
    %v950 = vsel %vm837, %v949, %v903
    %v951 = vsel %vm839, %v950, %v938
    %v952 = vsel %vm841, %v951, %v942
    %v953 = vsel %vm843, %v952, %v915
    %v954 = vsel %vm845, %v953, %v919
    %v955 = vsel %vm847, %v954, %v946
    %v956 = vrot.slane %v790, 4
    %957 = vrot.lane.b32.xlu0 %v956, 16
    %v958 = vpop.permute.xlu0 %957
    %v960 = vrot.slane %v791, 6
    %961 = vrot.lane.b32.xlu0 %v960, 24
    %v962 = vpop.permute.xlu0 %961
    %v964 = vrot.slane %v793, 4
    %965 = vrot.lane.b32.xlu0 %v964, 48
    %v966 = vpop.permute.xlu0 %965
    %v968 = vrot.slane %v793, 6
    %969 = vrot.lane.b32.xlu0 %v968, 56
    %v970 = vpop.permute.xlu0 %969
    %v972 = vsel %vm835, %v948, %v958
    %v973 = vsel %vm837, %v972, %v962
    %v974 = vsel %vm839, %v973, %v938
    %v975 = vsel %vm841, %v974, %v942
    %v976 = vsel %vm843, %v975, %v966
    %v977 = vsel %vm845, %v976, %v970
    %v978 = vsel %vm847, %v977, %v946
    %v979 = vrot.slane %v792, 2
    %980 = vrot.lane.b32.xlu0 %v979, 8
    %v981 = vpop.permute.xlu0 %980
    %983 = vrot.lane.b32.xlu0 %v913, 16
    %v984 = vpop.permute.xlu0 %983
    %986 = vrot.lane.b32.xlu0 %v968, 24
    %v987 = vpop.permute.xlu0 %986
    %990 = vrot.lane.b32.xlu0 %v794, 32
    %v991 = vpop.permute.xlu0 %990
    %v993 = vrot.slane %v794, 2
    %994 = vrot.lane.b32.xlu0 %v993, 40
    %v995 = vpop.permute.xlu0 %994
    %v998 = vrot.slane %v795, 4
    %999 = vrot.lane.b32.xlu0 %v998, 48
    %v1000 = vpop.permute.xlu0 %999
    %v1002 = vrot.slane %v795, 6
    %1003 = vrot.lane.b32.xlu0 %v1002, 56
    %v1004 = vpop.permute.xlu0 %1003
    %1007 = vrot.lane.b32.xlu0 %v796, 64
    %v1008 = vpop.permute.xlu0 %1007
    %v1010 = vsel %vm833, %v792, %v981
    %v1011 = vsel %vm835, %v1010, %v984
    %v1012 = vsel %vm837, %v1011, %v987
    %v1013 = vsel %vm839, %v1012, %v991
    %v1014 = vsel %vm841, %v1013, %v995
    %v1015 = vsel %vm843, %v1014, %v1000
    %v1016 = vsel %vm845, %v1015, %v1004
    %v1017 = vsel %vm847, %v1016, %v1008
    %1018 = vrot.lane.b32.xlu0 %v964, 16
    %v1019 = vpop.permute.xlu0 %1018
    %v1021 = vrot.slane %v794, 6
    %1022 = vrot.lane.b32.xlu0 %v1021, 24
    %v1023 = vpop.permute.xlu0 %1022
    %v1025 = vrot.slane %v796, 4
    %1026 = vrot.lane.b32.xlu0 %v1025, 48
    %v1027 = vpop.permute.xlu0 %1026
    %v1029 = vrot.slane %v796, 6
    %1030 = vrot.lane.b32.xlu0 %v1029, 56
    %v1031 = vpop.permute.xlu0 %1030
    %v1033 = vsel %vm835, %v1010, %v1019
    %v1034 = vsel %vm837, %v1033, %v1023
    %v1035 = vsel %vm839, %v1034, %v991
    %v1036 = vsel %vm841, %v1035, %v995
    %v1037 = vsel %vm843, %v1036, %v1027
    %v1038 = vsel %vm845, %v1037, %v1031
    %v1039 = vsel %vm847, %v1038, %v1008
    %v1040 = vrot.slane %v793, 2
    %1041 = vrot.lane.b32.xlu0 %v1040, 8
    %v1042 = vpop.permute.xlu0 %1041
    %1044 = vrot.lane.b32.xlu0 %v795, 32
    %v1045 = vpop.permute.xlu0 %1044
    %v1047 = vrot.slane %v795, 2
    %1048 = vrot.lane.b32.xlu0 %v1047, 40
    %v1049 = vpop.permute.xlu0 %1048
    %1052 = vrot.lane.b32.xlu0 %v797, 64
    %v1053 = vpop.permute.xlu0 %1052
    %v1055 = vsel %vm833, %v793, %v1042
    %v1056 = vsel %vm835, %v1055, %v1019
    %v1057 = vsel %vm837, %v1056, %v1023
    %v1058 = vsel %vm839, %v1057, %v1045
    %v1059 = vsel %vm841, %v1058, %v1049
    %v1060 = vsel %vm843, %v1059, %v1027
    %v1061 = vsel %vm845, %v1060, %v1031
    %v1062 = vsel %vm847, %v1061, %v1053
    %v1064 = vrot.slane %v871, 2
    %v1067 = vrot.slane %v894, 4
    %v1070 = vrot.slane %v931, 6
    %v1073 = vrot.slane %v978, 2
    %v1076 = vrot.slane %v1017, 4
    %v1079 = vrot.slane %v1039, 6
    %vm1081 = vcmask 1041408
    %v1082 = vsel %vm1081, %v848, %v1064
    %v1083 = vsel %vm273, %v1082, %v1067
    %vm1084 = vcmask 1045504
    %v1085 = vsel %vm1084, %v1083, %v1070
    %v1086 = vsel %vm1081, %v955, %v1073
    %v1087 = vsel %vm273, %v1086, %v1076
    %v1088 = vsel %vm1084, %v1087, %v1079
    %v1089 = vld [vmem:[%s3] sm:$0xff]
    %v1090 = vld [vmem:[%s3 + $0x8] sm:$0xff]
    %v1091 = vld [vmem:[%s3 + $0x10] sm:$0xff]
    %v1092 = vld [vmem:[%s3 + $0x18] sm:$0xff]
    %v1093 = vld [vmem:[%s3 + $0x20] sm:$0xff]
    %v1094 = vld [vmem:[%s3 + $0x28] sm:$0xff]
    %v1095 = vld [vmem:[%s3 + $0x30] sm:$0xff]
    %v1096 = vld [vmem:[%s3 + $0x38] sm:$0xff]
    %v1097 = vld [vmem:[%s3 + $0x40] sm:$0xff]
    %v1098 = vld [vmem:[%s4] sm:$0x1]
    %v1100 = vlaneseq
    %v1101 = vshrl.u32 %v1100, 7
    %v1102 = vsub.s32 0, %v1101
    %v1103 = vrot.slane %v1098, %v1102
    %vm1105 = vcmask 588800
    %v1107 = vsel %vm1105, %v1085, 0
    %v1110 = vsel %vm1105, %v1088, 0
    %v1113 = vsel %vm1105, %v1062, 0
    %1115 = vmatprep.subr.mxu0 0.0
    %1116 = vmatpush1.msra.mxu0 0.0
    %1117 = vmatprep.subr.mxu0 0.0
    %1118 = vmatpush1.msra.mxu0 0.0
    %1119 = vmatprep.subr.mxu0 0.0
    %1120 = vmatpush1.msra.mxu0 0.0
    %1121 = vmatprep.subr.mxu0 0.0
    %1122 = vmatpush1.msra.mxu0 0.0
    %1123 = vmatprep.subr.mxu0 0.0
    %1124 = vmatpush1.msra.mxu0 0.0
    %1125 = vmatprep.subr.mxu0 0.0
    %1126 = vmatpush1.msra.mxu0 0.0
    %1127 = vmatprep.subr.mxu0 0.0
    %1128 = vmatpush1.msra.mxu0 0.0
    %1129 = vmatprep.subr.mxu0 0.0
    %1130 = vmatpush1.msra.mxu0 %v1097
    %1131 = vmatprep.subr.mxu0 0.0
    %1132 = vmatpush1.msra.mxu0 %v1096
    %1133 = vmatprep.subr.mxu0 0.0
    %1134 = vmatpush1.msra.mxu0 %v1095
    %1135 = vmatprep.subr.mxu0 0.0
    %1136 = vmatpush1.msra.mxu0 %v1094
    %1137 = vmatprep.subr.mxu0 0.0
    %1138 = vmatpush1.msra.mxu0 %v1093
    %1139 = vmatprep.subr.mxu0 0.0
    %1140 = vmatpush1.msra.mxu0 %v1092
    %1141 = vmatprep.subr.mxu0 0.0
    %1142 = vmatpush1.msra.mxu0 %v1091
    %1143 = vmatprep.subr.mxu0 0.0
    %1144 = vmatpush1.msra.mxu0 %v1090
    %1145 = vmatprep.subr.mxu0 0.0
    %1146 = vmatpush1.msra.mxu0 %v1089
    %1147 = vmatprep.subr.mxu0 0.0
    %1148 = vmatpush2.msra.mxu0 0.0
    %1149 = vmatprep.subr.mxu0 0.0
    %1150 = vmatpush2.msra.mxu0 0.0
    %1151 = vmatprep.subr.mxu0 0.0
    %1152 = vmatpush2.msra.mxu0 0.0
    %1153 = vmatprep.subr.mxu0 0.0
    %1154 = vmatpush2.msra.mxu0 0.0
    %1155 = vmatprep.subr.mxu0 0.0
    %1156 = vmatpush2.msra.mxu0 0.0
    %1157 = vmatprep.subr.mxu0 0.0
    %1158 = vmatpush2.msra.mxu0 0.0
    %1159 = vmatprep.subr.mxu0 0.0
    %1160 = vmatpush2.msra.mxu0 0.0
    %1161 = vmatprep.subr.mxu0 0.0
    %1162 = vmatpush2.msra.mxu0 0.0
    %1163 = vmatprep.subr.mxu0 0.0
    %1164 = vmatpush2.msra.mxu0 0.0
    %1165 = vmatprep.subr.mxu0 0.0
    %1166 = vmatpush2.msra.mxu0 0.0
    %1167 = vmatprep.subr.mxu0 0.0
    %1168 = vmatpush2.msra.mxu0 0.0
    %1169 = vmatprep.subr.mxu0 0.0
    %1170 = vmatpush2.msra.mxu0 0.0
    %1171 = vmatprep.subr.mxu0 0.0
    %1172 = vmatpush2.msra.mxu0 0.0
    %1173 = vmatprep.subr.mxu0 0.0
    %1174 = vmatpush2.msra.mxu0 0.0
    %1175 = vmatprep.subr.mxu0 0.0
    %1176 = vmatpush2.msra.mxu0 0.0
    %1177 = vmatprep.subr.mxu0 0.0
    %1178 = vmatpush2.msra.mxu0 0.0
    %1179 = vmatprep.mubr.f32.mxu0 0.0
    %1180 = vmatmul.mubr.f32.gmra.mxu0 %v1107
    %v1181 = vpop.f32.mrf.mxu0
    %v1182 = vadd.f32 %v1103, %v1181
    %v1183 = vpop.f32.mrf.mxu0
    %1184 = vmatprep.mubr.f32.mxu0 0.0
    %1185 = vmatmul.mubr.f32.gmra.mxu0 %v1110
    %v1186 = vpop.f32.mrf.mxu0
    %v1187 = vadd.f32 %v1103, %v1186
    %v1188 = vpop.f32.mrf.mxu0
    %1189 = vmatprep.mubr.f32.mxu0 0.0
    %1190 = vmatmul.mubr.f32.gmra.mxu0 %v1113
    %v1191 = vpop.f32.mrf.mxu0
    %v1192 = vadd.f32 %v1103, %v1191
    %v1193 = vpop.f32.mrf.mxu0
    %1194 = vdwg.mxu0
    %vm1195 = vcmp.ge.f32.partialorder %v1182, 0.0
    %vm1196 = vcmp.ge.f32.partialorder %v1187, 0.0
    %vm1197 = vcmp.ge.f32.partialorder %v1192, 0.0
    %v1198 = vstv %s50
    %v1199 = vmul.f32 %v1198, %v1182
    %v1200 = vmul.f32 %v1198, %v1187
    %v1201 = vmul.f32 %v1198, %v1192
    %v1202 = vsel %vm1195, %v1182, %v1199
    %v1203 = vsel %vm1196, %v1187, %v1200
    %v1204 = vsel %vm1197, %v1192, %v1201
    %v1206 = vrot.slane %v1202, 2
    %1207 = vrot.lane.b32.xlu0 %v1206, 8
    %v1208 = vpop.permute.xlu0 %1207
    %v1210 = vrot.slane %v1202, 4
    %1211 = vrot.lane.b32.xlu0 %v1210, 16
    %v1212 = vpop.permute.xlu0 %1211
    %v1214 = vrot.slane %v1202, 6
    %1215 = vrot.lane.b32.xlu0 %v1214, 24
    %v1216 = vpop.permute.xlu0 %1215
    %1219 = vrot.lane.b32.xlu0 %v1203, 32
    %v1220 = vpop.permute.xlu0 %1219
    %v1222 = vrot.slane %v1203, 2
    %1223 = vrot.lane.b32.xlu0 %v1222, 40
    %v1224 = vpop.permute.xlu0 %1223
    %v1226 = vrot.slane %v1203, 4
    %1227 = vrot.lane.b32.xlu0 %v1226, 48
    %v1228 = vpop.permute.xlu0 %1227
    %v1230 = vrot.slane %v1203, 6
    %1231 = vrot.lane.b32.xlu0 %v1230, 56
    %v1232 = vpop.permute.xlu0 %1231
    %1235 = vrot.lane.b32.xlu0 %v1204, 64
    %v1236 = vpop.permute.xlu0 %1235
    %v1238 = vsel %vm833, %v1202, %v1208
    %v1239 = vsel %vm835, %v1238, %v1212
    %v1240 = vsel %vm837, %v1239, %v1216
    %v1241 = vsel %vm839, %v1240, %v1220
    %v1242 = vsel %vm841, %v1241, %v1224
    %v1243 = vsel %vm843, %v1242, %v1228
    %v1244 = vsel %vm845, %v1243, %v1232
    %v1245 = vsel %vm847, %v1244, %v1236
    %v1246 = vld [vmem:[%s5] sm:$0xff]
    %v1247 = vld [vmem:[%s5 + $0x8] sm:$0xff]
    %v1248 = vld [vmem:[%s5 + $0x10] sm:$0xff]
    %v1249 = vld [vmem:[%s5 + $0x18] sm:$0xff]
    %v1250 = vld [vmem:[%s5 + $0x20] sm:$0xff]
    %v1251 = vld [vmem:[%s5 + $0x28] sm:$0xff]
    %v1252 = vld [vmem:[%s5 + $0x30] sm:$0xff]
    %v1253 = vld [vmem:[%s5 + $0x38] sm:$0xff]
    %v1254 = vld [vmem:[%s5 + $0x40] sm:$0xff]
    %v1255 = vld [vmem:[%s6] sm:$0x1]
    %v1257 = vlaneseq
    %v1258 = vshrl.u32 %v1257, 7
    %v1259 = vsub.s32 0, %v1258
    %v1260 = vrot.slane %v1255, %v1259
    %v1263 = vsel %vm1105, %v1245, 0
    %1265 = vmatprep.subr.mxu0 0.0
    %1266 = vmatpush1.msra.mxu0 0.0
    %1267 = vmatprep.subr.mxu0 0.0
    %1268 = vmatpush1.msra.mxu0 0.0
    %1269 = vmatprep.subr.mxu0 0.0
    %1270 = vmatpush1.msra.mxu0 0.0
    %1271 = vmatprep.subr.mxu0 0.0
    %1272 = vmatpush1.msra.mxu0 0.0
    %1273 = vmatprep.subr.mxu0 0.0
    %1274 = vmatpush1.msra.mxu0 0.0
    %1275 = vmatprep.subr.mxu0 0.0
    %1276 = vmatpush1.msra.mxu0 0.0
    %1277 = vmatprep.subr.mxu0 0.0
    %1278 = vmatpush1.msra.mxu0 0.0
    %1279 = vmatprep.subr.mxu0 0.0
    %1280 = vmatpush1.msra.mxu0 %v1254
    %1281 = vmatprep.subr.mxu0 0.0
    %1282 = vmatpush1.msra.mxu0 %v1253
    %1283 = vmatprep.subr.mxu0 0.0
    %1284 = vmatpush1.msra.mxu0 %v1252
    %1285 = vmatprep.subr.mxu0 0.0
    %1286 = vmatpush1.msra.mxu0 %v1251
    %1287 = vmatprep.subr.mxu0 0.0
    %1288 = vmatpush1.msra.mxu0 %v1250
    %1289 = vmatprep.subr.mxu0 0.0
    %1290 = vmatpush1.msra.mxu0 %v1249
    %1291 = vmatprep.subr.mxu0 0.0
    %1292 = vmatpush1.msra.mxu0 %v1248
    %1293 = vmatprep.subr.mxu0 0.0
    %1294 = vmatpush1.msra.mxu0 %v1247
    %1295 = vmatprep.subr.mxu0 0.0
    %1296 = vmatpush1.msra.mxu0 %v1246
    %1297 = vmatprep.subr.mxu0 0.0
    %1298 = vmatpush2.msra.mxu0 0.0
    %1299 = vmatprep.subr.mxu0 0.0
    %1300 = vmatpush2.msra.mxu0 0.0
    %1301 = vmatprep.subr.mxu0 0.0
    %1302 = vmatpush2.msra.mxu0 0.0
    %1303 = vmatprep.subr.mxu0 0.0
    %1304 = vmatpush2.msra.mxu0 0.0
    %1305 = vmatprep.subr.mxu0 0.0
    %1306 = vmatpush2.msra.mxu0 0.0
    %1307 = vmatprep.subr.mxu0 0.0
    %1308 = vmatpush2.msra.mxu0 0.0
    %1309 = vmatprep.subr.mxu0 0.0
    %1310 = vmatpush2.msra.mxu0 0.0
    %1311 = vmatprep.subr.mxu0 0.0
    %1312 = vmatpush2.msra.mxu0 0.0
    %1313 = vmatprep.subr.mxu0 0.0
    %1314 = vmatpush2.msra.mxu0 0.0
    %1315 = vmatprep.subr.mxu0 0.0
    %1316 = vmatpush2.msra.mxu0 0.0
    %1317 = vmatprep.subr.mxu0 0.0
    %1318 = vmatpush2.msra.mxu0 0.0
    %1319 = vmatprep.subr.mxu0 0.0
    %1320 = vmatpush2.msra.mxu0 0.0
    %1321 = vmatprep.subr.mxu0 0.0
    %1322 = vmatpush2.msra.mxu0 0.0
    %1323 = vmatprep.subr.mxu0 0.0
    %1324 = vmatpush2.msra.mxu0 0.0
    %1325 = vmatprep.subr.mxu0 0.0
    %1326 = vmatpush2.msra.mxu0 0.0
    %1327 = vmatprep.subr.mxu0 0.0
    %1328 = vmatpush2.msra.mxu0 0.0
    %1329 = vmatprep.mubr.f32.mxu0 0.0
    %1330 = vmatmul.mubr.f32.gmra.mxu0 %v1263
    %v1331 = vpop.f32.mrf.mxu0
    %v1332 = vadd.f32 %v1260, %v1331
    %v1333 = vpop.f32.mrf.mxu0
    %1334 = vdwg.mxu0
    %vm1335 = vcmp.ge.f32.partialorder %v1332, 0.0
    %v1336 = vstv %s51
    %v1337 = vmul.f32 %v1336, %v1332
    %v1338 = vsel %vm1335, %v1332, %v1337
    %v1339 = vld [vmem:[%s7] sm:$0xff]
    %v1340 = vld [vmem:[%s7 + $0x8] sm:$0xff]
    %v1341 = vld [vmem:[%s7 + $0x10] sm:$0xff]
    %v1342 = vld [vmem:[%s7 + $0x18] sm:$0xff]
    %v1343 = vld [vmem:[%s7 + $0x20] sm:$0xff]
    %v1344 = vld [vmem:[%s7 + $0x28] sm:$0xff]
    %v1345 = vld [vmem:[%s7 + $0x30] sm:$0xff]
    %v1346 = vld [vmem:[%s7 + $0x38] sm:$0xff]
    %v1347 = vld [vmem:[%s8] sm:$0x1]
    %v1349 = vlaneseq
    %v1350 = vshrl.u32 %v1349, 7
    %v1351 = vsub.s32 0, %v1350
    %v1352 = vrot.slane %v1347, %v1351
    %v1355 = vsel %vm847, %v1338, 0
    %1357 = vmatprep.subr.mxu0 0.0
    %1358 = vmatpush1.msra.mxu0 0.0
    %1359 = vmatprep.subr.mxu0 0.0
    %1360 = vmatpush1.msra.mxu0 0.0
    %1361 = vmatprep.subr.mxu0 0.0
    %1362 = vmatpush1.msra.mxu0 0.0
    %1363 = vmatprep.subr.mxu0 0.0
    %1364 = vmatpush1.msra.mxu0 0.0
    %1365 = vmatprep.subr.mxu0 0.0
    %1366 = vmatpush1.msra.mxu0 0.0
    %1367 = vmatprep.subr.mxu0 0.0
    %1368 = vmatpush1.msra.mxu0 0.0
    %1369 = vmatprep.subr.mxu0 0.0
    %1370 = vmatpush1.msra.mxu0 0.0
    %1371 = vmatprep.subr.mxu0 0.0
    %1372 = vmatpush1.msra.mxu0 0.0
    %1373 = vmatprep.subr.mxu0 0.0
    %1374 = vmatpush1.msra.mxu0 %v1346
    %1375 = vmatprep.subr.mxu0 0.0
    %1376 = vmatpush1.msra.mxu0 %v1345
    %1377 = vmatprep.subr.mxu0 0.0
    %1378 = vmatpush1.msra.mxu0 %v1344
    %1379 = vmatprep.subr.mxu0 0.0
    %1380 = vmatpush1.msra.mxu0 %v1343
    %1381 = vmatprep.subr.mxu0 0.0
    %1382 = vmatpush1.msra.mxu0 %v1342
    %1383 = vmatprep.subr.mxu0 0.0
    %1384 = vmatpush1.msra.mxu0 %v1341
    %1385 = vmatprep.subr.mxu0 0.0
    %1386 = vmatpush1.msra.mxu0 %v1340
    %1387 = vmatprep.subr.mxu0 0.0
    %1388 = vmatpush1.msra.mxu0 %v1339
    %1389 = vmatprep.subr.mxu0 0.0
    %1390 = vmatpush2.msra.mxu0 0.0
    %1391 = vmatprep.subr.mxu0 0.0
    %1392 = vmatpush2.msra.mxu0 0.0
    %1393 = vmatprep.subr.mxu0 0.0
    %1394 = vmatpush2.msra.mxu0 0.0
    %1395 = vmatprep.subr.mxu0 0.0
    %1396 = vmatpush2.msra.mxu0 0.0
    %1397 = vmatprep.subr.mxu0 0.0
    %1398 = vmatpush2.msra.mxu0 0.0
    %1399 = vmatprep.subr.mxu0 0.0
    %1400 = vmatpush2.msra.mxu0 0.0
    %1401 = vmatprep.subr.mxu0 0.0
    %1402 = vmatpush2.msra.mxu0 0.0
    %1403 = vmatprep.subr.mxu0 0.0
    %1404 = vmatpush2.msra.mxu0 0.0
    %1405 = vmatprep.subr.mxu0 0.0
    %1406 = vmatpush2.msra.mxu0 0.0
    %1407 = vmatprep.subr.mxu0 0.0
    %1408 = vmatpush2.msra.mxu0 0.0
    %1409 = vmatprep.subr.mxu0 0.0
    %1410 = vmatpush2.msra.mxu0 0.0
    %1411 = vmatprep.subr.mxu0 0.0
    %1412 = vmatpush2.msra.mxu0 0.0
    %1413 = vmatprep.subr.mxu0 0.0
    %1414 = vmatpush2.msra.mxu0 0.0
    %1415 = vmatprep.subr.mxu0 0.0
    %1416 = vmatpush2.msra.mxu0 0.0
    %1417 = vmatprep.subr.mxu0 0.0
    %1418 = vmatpush2.msra.mxu0 0.0
    %1419 = vmatprep.subr.mxu0 0.0
    %1420 = vmatpush2.msra.mxu0 0.0
    %1421 = vmatprep.mubr.f32.mxu0 0.0
    %1422 = vmatmul.mubr.f32.gmra.mxu0 %v1355
    %v1423 = vpop.f32.mrf.mxu0
    %v1424 = vadd.f32 %v1352, %v1423
    %v1425 = vpop.f32.mrf.mxu0
    %1426 = vdwg.mxu0
    %1427 = vst [vmem:[#allocation5] sm:$0x3] %v1424
    // Predicated region
    $region46: #{encoder_forward.1} parent=1 // pred_check
      _
    $region47: #{encoder_forward.1} parent=1 // pred_check_branch
      %1429 = sbr.rel (0) target = $region49
    $region48: #{encoder_forward.1} parent=1 // pred_region
      %s1431 = ssub.s32 32, 32
      %1432 = vsyncadd [#allocation3], %s1431
      %s1434 = sshll.u32 [#allocation5], 4
      %s1435 = int_to_ptr.vmem [resolvable:$true] %s1434
      %1437 = dma.vmem_to_hbm [thread:$0]  %s1435, 32, %s10, [#allocation3]
    $region49: #{encoder_forward.1} parent=1 // pred_fallthru
      _
    // Predicated region
    $region50: #{encoder_forward.1} parent=1 // pred_check
      _
    $region51: #{encoder_forward.1} parent=1 // pred_check_branch
      %1439 = sbr.rel (0) target = $region53
    $region52: #{encoder_forward.1} parent=1 // pred_region
      %1440 = dma.done [#allocation3], 32
    $region53: #{encoder_forward.1} parent=1 // pred_fallthru
      _
    %1441 = vsyncpa [#allocation3], 1
    %1442 = vsyncpa [#allocation4], 1

</llo_original>
